<compile_context>
chip_gen: v6e
topology: v6e:2x2x1
jax: 0.10.0
libtpu: 0.0.40
codegen_flags: <defaults>
</compile_context>

<pallas_src>
import functools

import jax
import jax.numpy as jnp
from jax import lax
from jax.experimental import pallas as pl
from jax.experimental.pallas import tpu as pltpu


def _flash_sdpa_kernel(q_ref, k_ref, v_ref, o_ref, m_scr, l_scr, acc_scr, *, scale):
    """One (batch, q-tile, kv-tile) step of flash attention (online softmax).

    Refs (batch dim squeezed away by the BlockSpecs):
      q_ref: [tq, D]   k_ref: [tk, D]   v_ref: [tk, Dv]   o_ref: [tq, Dv]
    Scratch (f32, persistent across the kv grid axis):
      m_scr: [tq, 1]  running max
      l_scr: [tq, 1]  running softmax denominator
      acc_scr: [tq, Dv] unnormalized context accumulator
    """
    kv_idx = pl.program_id(2)
    kv_last = pl.num_programs(2) - 1

    @pl.when(kv_idx == 0)
    def _init():
        m_scr[...] = jnp.full(m_scr.shape, -jnp.inf, dtype=m_scr.dtype)
        l_scr[...] = jnp.zeros(l_scr.shape, dtype=l_scr.dtype)
        acc_scr[...] = jnp.zeros(acc_scr.shape, dtype=acc_scr.dtype)

    q = q_ref[...]                                    # [tq, D], native dtype
    if scale is not None:
        # fold the scale into Q: Lq*D multiplies instead of Lq*Lk
        q = q * jnp.asarray(scale, dtype=q.dtype)
    k = k_ref[...]                                    # [tk, D]
    v = v_ref[...]                                    # [tk, Dv]

    # scores = Q @ K^T, contracting the feature dim of both operands directly
    # (no materialized k.T); f32 accumulation on the MXU.
    s = lax.dot_general(
        q, k,
        dimension_numbers=(((1,), (1,)), ((), ())),
        preferred_element_type=jnp.float32,
    )                                                 # [tq, tk] f32

    m_prev = m_scr[...]                               # [tq, 1]
    m_new = jnp.maximum(m_prev, jnp.max(s, axis=-1, keepdims=True))
    alpha = jnp.exp(m_prev - m_new)                   # correction for old stats
    p = jnp.exp(s - m_new)                            # [tq, tk] unnormalized probs

    l_scr[...] = alpha * l_scr[...] + jnp.sum(p, axis=-1, keepdims=True)
    acc_scr[...] = alpha * acc_scr[...] + jnp.dot(
        p.astype(v.dtype), v, preferred_element_type=jnp.float32)
    m_scr[...] = m_new

    @pl.when(kv_idx == kv_last)
    def _finalize():
        # normalize once, after the PV matmuls (Lq*Dv work, not Lq*Lk);
        # approx reciprocal goes to the otherwise-idle EUP slot.
        inv_l = pl.reciprocal(l_scr[...], approx=True)
        o_ref[...] = (acc_scr[...] * inv_l).astype(o_ref.dtype)


def _pick_tile(dim, candidates):
    for c in candidates:
        if dim % c == 0:
            return c
    return dim  # full extent (always legal block shape)


def scaled_dot_product_attention(Q, K, V, scale=None, *, block_q=None, block_k=None):
    """Pallas flash-attention equivalent of Scaled_Dot_Product_Attention.forward.

    Q: [B, Lq, D], K: [B, Lk, D], V: [B, Lk, Dv] -> context [B, Lq, Dv]
    Matches PyTorch `if scale:` semantics (scale=None/0 -> no scaling).
    """
    if not scale:
        scale = None

    B, Lq, D = Q.shape
    Bk, Lk, Dk = K.shape
    Bv, Lv, Dv = V.shape
    assert Bk == B and Bv == B and Dk == D and Lv == Lk

    # Tile sizes: largest divisor <= 512 (multiples of 8 keep (8,128) tiling legal);
    # fall back to the full extent for tiny / odd sequence lengths.
    if block_q is None:
        block_q = _pick_tile(Lq, (512, 256, 128, 64, 32, 16, 8))
    if block_k is None:
        block_k = _pick_tile(Lk, (512, 256, 128, 64, 32, 16, 8))
    assert Lq % block_q == 0 and Lk % block_k == 0

    grid = (B, Lq // block_q, Lk // block_k)
    kernel = functools.partial(_flash_sdpa_kernel, scale=scale)

    return pl.pallas_call(
        kernel,
        out_shape=jax.ShapeDtypeStruct((B, Lq, Dv), Q.dtype),
        grid_spec=pltpu.PrefetchScalarGridSpec(
            num_scalar_prefetch=0,
            grid=grid,
            in_specs=[
                # leading None squeezes the batch dim -> kernel sees 2-D refs
                pl.BlockSpec((None, block_q, D), lambda b, qi, ki: (b, qi, 0)),
                pl.BlockSpec((None, block_k, D), lambda b, qi, ki: (b, ki, 0)),
                pl.BlockSpec((None, block_k, Dv), lambda b, qi, ki: (b, ki, 0)),
            ],
            # same output tile across the kv axis -> accumulator pattern
            out_specs=pl.BlockSpec((None, block_q, Dv), lambda b, qi, ki: (b, qi, 0)),
            scratch_shapes=[
                pltpu.VMEM((block_q, 1), jnp.float32),    # m: running max
                pltpu.VMEM((block_q, 1), jnp.float32),    # l: running denom
                pltpu.VMEM((block_q, Dv), jnp.float32),   # acc: unnormalized ctx
            ],
        ),
        compiler_params=pltpu.CompilerParams(
            dimension_semantics=("parallel", "parallel", "arbitrary"),
            vmem_limit_bytes=64 * 1024 * 1024,
        ),
    )(Q, K, V)


def _reference(Q, K, V, scale=None):
    scores = jnp.einsum("bqd,bkd->bqk", Q, K)
    if scale:
        scores = scores * scale
    attn = jax.nn.softmax(scores, axis=-1)
    return jnp.einsum("bqk,bkv->bqv", attn, V)


if __name__ == "__main__":
    key = jax.random.PRNGKey(0)
    kq, kk, kv = jax.random.split(key, 3)

    # lane-dense feature dims (multiples of 128); seq long enough to exercise
    # both q-tiling and the online-softmax accumulation across kv tiles.
    B, Lq, Lk, D, Dv = 2, 256, 256, 128, 128
    Q = jax.random.normal(kq, (B, Lq, D), dtype=jnp.float32)
    K = jax.random.normal(kk, (B, Lk, D), dtype=jnp.float32)
    V = jax.random.normal(kv, (B, Lk, Dv), dtype=jnp.float32)

    scale = 1.0 / (D ** 0.5)

    # explicit 128x128 tiles -> grid (2, 2, 2): exercises the flash accumulator
    out = scaled_dot_product_attention(Q, K, V, scale=scale, block_q=128, block_k=128)
    out = jax.block_until_ready(out)
    ref = _reference(Q, K, V, scale=scale)
    assert out.shape == (B, Lq, Dv)
    assert jnp.allclose(out, ref, atol=1e-2, rtol=1e-2), "mismatch vs reference"

    # default tile selection + scale=None path (PyTorch `if scale:` -> no scaling)
    out_ns = jax.block_until_ready(scaled_dot_product_attention(Q, K, V))
    ref_ns = _reference(Q, K, V)
    assert jnp.allclose(out_ns, ref_ns, atol=1e-2, rtol=1e-2), "mismatch (no scale)"

    print("KERNEL_OK")
</pallas_src>

<mosaic_0001>
module attributes {stable_mosaic.version = 11 : i64} {
  func.func @_flash_sdpa_kernel(%arg0: i32, %arg1: i32, %arg2: i32, %arg3: memref<1x128x128xf32, #tpu.memory_space<vmem>>, %arg4: memref<1x128x128xf32, #tpu.memory_space<vmem>>, %arg5: memref<1x128x128xf32, #tpu.memory_space<vmem>>, %arg6: memref<1x128x128xf32, #tpu.memory_space<vmem>>, %arg7: memref<128x1xf32, #tpu.memory_space<vmem>>, %arg8: memref<128x1xf32, #tpu.memory_space<vmem>>, %arg9: memref<128x128xf32, #tpu.memory_space<vmem>>) attributes {dimension_semantics = [#tpu.dimension_semantics<parallel>, #tpu.dimension_semantics<parallel>, #tpu.dimension_semantics<arbitrary>], iteration_bounds = array<i64: 2, 2, 2>, scalar_prefetch = 0 : i64, scratch_operands = 3 : i64, tpu.core_type = #tpu.core_type<tc>, window_params = [{transform_indices = @transform_0, window_bounds = array<i64: 1, 128, 128>}, {transform_indices = @transform_1, window_bounds = array<i64: 1, 128, 128>}, {transform_indices = @transform_2, window_bounds = array<i64: 1, 128, 128>}, {transform_indices = @transform_3, window_bounds = array<i64: 1, 128, 128>}]} {
    %c0_i32 = arith.constant 0 : i32
    %0 = arith.cmpi eq, %arg2, %c0_i32 : i32
    %1 = arith.extui %0 : i1 to i32
    %c0_i32_0 = arith.constant 0 : i32
    %2 = arith.cmpi ne, %1, %c0_i32_0 : i32
    scf.if %2 {
      %cst_26 = arith.constant 0xFF800000 : f32
      %37 = vector.broadcast %cst_26 : f32 to vector<128x1xf32>
      %c0_27 = arith.constant 0 : index
      %c0_28 = arith.constant 0 : index
      %38 = vector.load %arg7[%c0_27, %c0_28] : memref<128x1xf32, #tpu.memory_space<vmem>>, vector<128x1xf32>
      tpu.vector_store %arg7[%c0_27, %c0_28], %37 {strides = array<i32>} : memref<128x1xf32, #tpu.memory_space<vmem>>, vector<128x1xf32>,
      %cst_29 = arith.constant 0.000000e+00 : f32
      %39 = vector.broadcast %cst_29 : f32 to vector<128x1xf32>
      %c0_30 = arith.constant 0 : index
      %c0_31 = arith.constant 0 : index
      %40 = vector.load %arg8[%c0_30, %c0_31] : memref<128x1xf32, #tpu.memory_space<vmem>>, vector<128x1xf32>
      tpu.vector_store %arg8[%c0_30, %c0_31], %39 {strides = array<i32>} : memref<128x1xf32, #tpu.memory_space<vmem>>, vector<128x1xf32>,
      %cst_32 = arith.constant 0.000000e+00 : f32
      %41 = vector.broadcast %cst_32 : f32 to vector<128x128xf32>
      %c0_33 = arith.constant 0 : index
      %c0_34 = arith.constant 0 : index
      %42 = vector.load %arg9[%c0_33, %c0_34] : memref<128x128xf32, #tpu.memory_space<vmem>>, vector<128x128xf32>
      tpu.vector_store %arg9[%c0_33, %c0_34], %41 {strides = array<i32>} : memref<128x128xf32, #tpu.memory_space<vmem>>, vector<128x128xf32>,
    } else {
    }
    %c0 = arith.constant 0 : index
    %c0_1 = arith.constant 0 : index
    %c0_2 = arith.constant 0 : index
    %3 = vector.load %arg3[%c0, %c0_1, %c0_2] : memref<1x128x128xf32, #tpu.memory_space<vmem>>, vector<1x128x128xf32>
    %4 = vector.shape_cast %3 : vector<1x128x128xf32> to vector<128x128xf32>
    %cst = arith.constant 0.0883883461 : f32
    %5 = vector.broadcast %cst : f32 to vector<128x128xf32>
    %6 = arith.mulf %4, %5 : vector<128x128xf32>
    %c0_3 = arith.constant 0 : index
    %c0_4 = arith.constant 0 : index
    %c0_5 = arith.constant 0 : index
    %7 = vector.load %arg4[%c0_3, %c0_4, %c0_5] : memref<1x128x128xf32, #tpu.memory_space<vmem>>, vector<1x128x128xf32>
    %8 = vector.shape_cast %7 : vector<1x128x128xf32> to vector<128x128xf32>
    %c0_6 = arith.constant 0 : index
    %c0_7 = arith.constant 0 : index
    %c0_8 = arith.constant 0 : index
    %9 = vector.load %arg5[%c0_6, %c0_7, %c0_8] : memref<1x128x128xf32, #tpu.memory_space<vmem>>, vector<1x128x128xf32>
    %10 = vector.shape_cast %9 : vector<1x128x128xf32> to vector<128x128xf32>
    %cst_9 = arith.constant dense<0.000000e+00> : vector<128x128xf32>
    %11 = tpu.matmul %6, %8, %cst_9 {dimension_numbers = #tpu.dot_dimension_numbers<[1], [1], [0], [0], [0, 0, 1, 0], [], []>} : vector<128x128xf32>, vector<128x128xf32>, vector<128x128xf32> -> vector<128x128xf32>
    %c0_10 = arith.constant 0 : index
    %c0_11 = arith.constant 0 : index
    %12 = vector.load %arg7[%c0_10, %c0_11] : memref<128x1xf32, #tpu.memory_space<vmem>>, vector<128x1xf32>
    %cst_12 = arith.constant dense<0xFF800000> : vector<128xf32>
    %13 = vector.multi_reduction <maximumf>, %11, %cst_12 [1] : vector<128x128xf32> to vector<128xf32>
    %14 = vector.shape_cast %13 : vector<128xf32> to vector<128x1xf32>
    %15 = arith.maximumf %12, %14 : vector<128x1xf32>
    %16 = arith.subf %12, %15 : vector<128x1xf32>
    %17 = math.exp %16 : vector<128x1xf32>
    %18 = vector.broadcast %15 : vector<128x1xf32> to vector<128x128xf32>
    %19 = arith.subf %11, %18 : vector<128x128xf32>
    %20 = math.exp %19 : vector<128x128xf32>
    %c0_13 = arith.constant 0 : index
    %c0_14 = arith.constant 0 : index
    %21 = vector.load %arg8[%c0_13, %c0_14] : memref<128x1xf32, #tpu.memory_space<vmem>>, vector<128x1xf32>
    %22 = arith.mulf %17, %21 : vector<128x1xf32>
    %cst_15 = arith.constant dense<0.000000e+00> : vector<128xf32>
    %23 = vector.multi_reduction <add>, %20, %cst_15 [1] : vector<128x128xf32> to vector<128xf32>
    %24 = vector.shape_cast %23 : vector<128xf32> to vector<128x1xf32>
    %25 = arith.addf %22, %24 : vector<128x1xf32>
    %c0_16 = arith.constant 0 : index
    %c0_17 = arith.constant 0 : index
    %26 = vector.load %arg8[%c0_16, %c0_17] : memref<128x1xf32, #tpu.memory_space<vmem>>, vector<128x1xf32>
    tpu.vector_store %arg8[%c0_16, %c0_17], %25 {strides = array<i32>} : memref<128x1xf32, #tpu.memory_space<vmem>>, vector<128x1xf32>,
    %c0_18 = arith.constant 0 : index
    %c0_19 = arith.constant 0 : index
    %27 = vector.load %arg9[%c0_18, %c0_19] : memref<128x128xf32, #tpu.memory_space<vmem>>, vector<128x128xf32>
    %28 = vector.broadcast %17 : vector<128x1xf32> to vector<128x128xf32>
    %29 = arith.mulf %28, %27 : vector<128x128xf32>
    %cst_20 = arith.constant dense<0.000000e+00> : vector<128x128xf32>
    %30 = tpu.matmul %20, %10, %cst_20 {dimension_numbers = #tpu.dot_dimension_numbers<[1], [0], [0], [1], [0, 0, 1, 1], [], []>} : vector<128x128xf32>, vector<128x128xf32>, vector<128x128xf32> -> vector<128x128xf32>
    %31 = arith.addf %29, %30 : vector<128x128xf32>
    %c0_21 = arith.constant 0 : index
    %c0_22 = arith.constant 0 : index
    %32 = vector.load %arg9[%c0_21, %c0_22] : memref<128x128xf32, #tpu.memory_space<vmem>>, vector<128x128xf32>
    tpu.vector_store %arg9[%c0_21, %c0_22], %31 {strides = array<i32>} : memref<128x128xf32, #tpu.memory_space<vmem>>, vector<128x128xf32>,
    %c0_23 = arith.constant 0 : index
    %c0_24 = arith.constant 0 : index
    %33 = vector.load %arg7[%c0_23, %c0_24] : memref<128x1xf32, #tpu.memory_space<vmem>>, vector<128x1xf32>
    tpu.vector_store %arg7[%c0_23, %c0_24], %15 {strides = array<i32>} : memref<128x1xf32, #tpu.memory_space<vmem>>, vector<128x1xf32>,
    %c1_i32 = arith.constant 1 : i32
    %34 = arith.cmpi eq, %arg2, %c1_i32 : i32
    %35 = arith.extui %34 : i1 to i32
    %c0_i32_25 = arith.constant 0 : i32
    %36 = arith.cmpi ne, %35, %c0_i32_25 : i32
    scf.if %36 {
      %c0_26 = arith.constant 0 : index
      %c0_27 = arith.constant 0 : index
      %37 = vector.load %arg8[%c0_26, %c0_27] : memref<128x1xf32, #tpu.memory_space<vmem>>, vector<128x1xf32>
      %38 = tpu.reciprocal %37 {approx = true} : vector<128x1xf32> -> vector<128x1xf32>
      %c0_28 = arith.constant 0 : index
      %c0_29 = arith.constant 0 : index
      %39 = vector.load %arg9[%c0_28, %c0_29] : memref<128x128xf32, #tpu.memory_space<vmem>>, vector<128x128xf32>
      %40 = vector.broadcast %38 : vector<128x1xf32> to vector<128x128xf32>
      %41 = arith.mulf %39, %40 : vector<128x128xf32>
      %c0_30 = arith.constant 0 : index
      %c0_31 = arith.constant 0 : index
      %c0_32 = arith.constant 0 : index
      %42 = vector.load %arg6[%c0_30, %c0_31, %c0_32] : memref<1x128x128xf32, #tpu.memory_space<vmem>>, vector<1x128x128xf32>
      %43 = vector.shape_cast %42 : vector<1x128x128xf32> to vector<128x128xf32>
      %44 = vector.shape_cast %41 : vector<128x128xf32> to vector<1x128x128xf32>
      tpu.vector_store %arg6[%c0_30, %c0_31, %c0_32], %44 {strides = array<i32>} : memref<1x128x128xf32, #tpu.memory_space<vmem>>, vector<1x128x128xf32>,
    } else {
    }
    return
  }
  func.func @transform_0(%arg0: i32, %arg1: i32, %arg2: i32) -> (i32, i32, i32) {
    %c0_i32 = arith.constant 0 : i32
    %c0_i32_0 = arith.constant 0 : i32
    return %arg0, %arg1, %c0_i32 : i32, i32, i32
  }
  func.func @transform_1(%arg0: i32, %arg1: i32, %arg2: i32) -> (i32, i32, i32) {
    %c0_i32 = arith.constant 0 : i32
    %c0_i32_0 = arith.constant 0 : i32
    return %arg0, %arg2, %c0_i32 : i32, i32, i32
  }
  func.func @transform_2(%arg0: i32, %arg1: i32, %arg2: i32) -> (i32, i32, i32) {
    %c0_i32 = arith.constant 0 : i32
    %c0_i32_0 = arith.constant 0 : i32
    return %arg0, %arg2, %c0_i32 : i32, i32, i32
  }
  func.func @transform_3(%arg0: i32, %arg1: i32, %arg2: i32) -> (i32, i32, i32) {
    %c0_i32 = arith.constant 0 : i32
    %c0_i32_0 = arith.constant 0 : i32
    return %arg0, %arg1, %c0_i32 : i32, i32, i32
  }
}

</mosaic_0001>

<llo_original>
// kernel: tpu_custom_call.1
$region0: #{tpu_custom_call.1}
  #allocation0 [shape = 'u32[]', space=smem, size = 0x4, offset = 0x4, fixed_abs, tag = 'smem constant byte address 0x4 - core index']
  #allocation1 [shape = 'u32[144,128]{1,0:T(1,128)}', space=vmem, size = 0x12000, scoped, tag = 'internal scratch']
  #allocation2 [shape = 'f32[128,1]{1,0:T(8,128)}', space=vmem, size = 0x10000, scoped, tag = 'scratch operand']
  #allocation3 [shape = 'f32[128,1]{1,0:T(8,128)}', space=vmem, size = 0x10000, scoped, tag = 'scratch operand']
  #allocation4 [shape = 'f32[128,128]{1,0:T(8,128)}', space=vmem, size = 0x10000, scoped, tag = 'scratch operand']
  %s0 = inlined_call_operand.hbm [shape: f32[2,256,128], index: 0, kind: input, shape index: {}]
  %s1 = inlined_call_operand.hbm [shape: f32[2,256,128], index: 1, kind: input, shape index: {}]
  %s2 = inlined_call_operand.hbm [shape: f32[2,256,128], index: 2, kind: input, shape index: {}]
  %s3 = inlined_call_operand.hbm [shape: f32[2,256,128], index: 3, kind: output, shape index: {}]
  %s4 = sld [smem:[#allocation0]]
  $region65: #{tpu_custom_call.1} parent=0
    _
  %s6 = ssub.s32 1, %s4
  %s7 = scalar_select 0, %s6, %s4
  $region1: #{tpu_custom_call.1} parent=0
    #allocation5 [shape = 'u8[131072]{0}', space=vmem, size = 0x20000, scoped, tag = 'input window, operand 0']
    #allocation6 [shape = 's32[2]{0}', space=sflag, size = 0x8, scoped, tag = 'scoped memory for tpu_custom_call.1']
    #allocation7 [shape = 's32[2]{0}', space=sflag, size = 0x8, scoped, tag = 'scoped memory for tpu_custom_call.1']
    #allocation8 [shape = 'u8[131072]{0}', space=vmem, size = 0x20000, scoped, tag = 'input window, operand 1']
    #allocation9 [shape = 's32[2]{0}', space=sflag, size = 0x8, scoped, tag = 'scoped memory for tpu_custom_call.1']
    #allocation10 [shape = 'u8[131072]{0}', space=vmem, size = 0x20000, scoped, tag = 'input window, operand 2']
    #allocation11 [shape = 'u8[131072]{0}', space=vmem, size = 0x20000, scoped, tag = 'output window, operand 0']
    %8 = vsyncpa [#allocation6], 0
    %s9 = scalar_lea.sflag [#allocation6], 1
    %10 = vsyncpa %s9, 0
    %11 = vsyncpa [#allocation9], 0
    %s12 = scalar_lea.sflag [#allocation9], 1
    %13 = vsyncpa %s12, 0
    %14 = vsyncpa [#allocation7], 0
    %s15 = scalar_lea.sflag [#allocation7], 1
    %16 = vsyncpa %s15, 0
    loop: start=0, step=1, limit=10
    $region2: #{tpu_custom_call.1} parent=1 // loop_pre_header
      _
    $region3: #{tpu_custom_call.1} parent=1 // loop_header
      %s18 = sphi 0, %s22
      %p19 = scmp.ge.s32.totalorder %s18, 10
      %s25 = sphi 0, %s44
      %s26 = sphi 0, %s40
      %s27 = sphi 0, %s36
      %s28 = sphi 0, %s25
      %s29 = sphi 0, %s26
      %s30 = sphi 0, %s27
      %s31 = sphi 0, %s28
      %s32 = sphi 0, %s29
      %s33 = sphi 0, %s30
      %s49 = sphi 0, %s51
      %s52 = sphi 0, %s49
      %s53 = sphi 0, %s52
      %s69 = sphi 0, %s53
      %s77 = sphi 0, %s79
      %s80 = sphi 0, %s77
      %s81 = sphi 0, %s80
      %s97 = sphi 0, %s81
      %s105 = sphi 0, %s107
      %s108 = sphi 0, %s105
      %s109 = sphi 0, %s108
      %s125 = sphi 0, %s109
      %s133 = sphi 0, %s135
      %s136 = sphi 0, %s133
      %s137 = sphi 0, %s136
      %s153 = sphi 0, %s137
    $region4: #{tpu_custom_call.1} parent=1 // loop_header_branch
      %21 = sbr.rel (%p19) target = $region8
    $region5: #{tpu_custom_call.1} parent=1 // loop_body
      %s23 = ssub.s32 %s18, 1
      %s24 = ssub.s32 %s18, 2
      %s34 = sadd.s32 1, %s27
      %p35 = scmp.ge.s32.totalorder %s34, 2
      %s36 = scalar_select %p35, 0, %s34
      %s37 = sadd.s32 1, %s26
      %s38 = scalar_select %p35, %s37, %s26
      %p39 = scmp.ge.s32.totalorder %s38, 2
      %s40 = scalar_select %p39, 0, %s38
      %s41 = sadd.s32 1, %s25
      %s42 = scalar_select %p39, %s41, %s25
      %p43 = scmp.ge.s32.totalorder %s42, 2
      %s44 = scalar_select %p43, 0, %s42
      %s45 = ssub.s32 %s25, %s44
      %s46 = ssub.s32 %s26, %s40
      %s47 = sor.u32 %s45, %s46
      %p48 = scmp.eq.s32.totalorder %s47, 0
      %s50 = sadd.s32 %s49, 1
      %s51 = scalar_select %p48, %s49, %s50
      %p54 = pneg %p48
      %p55 = scmp.eq.s32.totalorder %s18, 7
      %p56 = por %p54, %p55
      %p57 = scmp.ne.s32.totalorder %s49, %s52
      %p58 = scmp.eq.s32.totalorder %s18, 0
      %p59 = por %p57, %p58
      %p60 = scmp.ne.s32.totalorder %s49, %s52
      %p61 = scmp.eq.s32.totalorder %s23, 7
      %p62 = por %p60, %p61
      %p63 = scmp.ne.s32.totalorder %s52, %s53
      %p64 = scmp.eq.s32.totalorder %s23, 0
      %p65 = por %p63, %p64
      %p66 = scmp.ne.s32.totalorder %s52, %s53
      %p67 = scmp.eq.s32.totalorder %s24, 7
      %p68 = por %p66, %p67
      %p70 = scmp.ne.s32.totalorder %s53, %s69
      %p71 = scmp.eq.s32.totalorder %s24, 0
      %p72 = por %p70, %p71
      %s73 = ssub.s32 %s25, %s44
      %s74 = ssub.s32 %s27, %s36
      %s75 = sor.u32 %s73, %s74
      %p76 = scmp.eq.s32.totalorder %s75, 0
      %s78 = sadd.s32 %s77, 1
      %s79 = scalar_select %p76, %s77, %s78
      %p82 = pneg %p76
      %p83 = scmp.eq.s32.totalorder %s18, 7
      %p84 = por %p82, %p83
      %p85 = scmp.ne.s32.totalorder %s77, %s80
      %p86 = scmp.eq.s32.totalorder %s18, 0
      %p87 = por %p85, %p86
      %p88 = scmp.ne.s32.totalorder %s77, %s80
      %p89 = scmp.eq.s32.totalorder %s23, 7
      %p90 = por %p88, %p89
      %p91 = scmp.ne.s32.totalorder %s80, %s81
      %p92 = scmp.eq.s32.totalorder %s23, 0
      %p93 = por %p91, %p92
      %p94 = scmp.ne.s32.totalorder %s80, %s81
      %p95 = scmp.eq.s32.totalorder %s24, 7
      %p96 = por %p94, %p95
      %p98 = scmp.ne.s32.totalorder %s81, %s97
      %p99 = scmp.eq.s32.totalorder %s24, 0
      %p100 = por %p98, %p99
      %s101 = ssub.s32 %s25, %s44
      %s102 = ssub.s32 %s27, %s36
      %s103 = sor.u32 %s101, %s102
      %p104 = scmp.eq.s32.totalorder %s103, 0
      %s106 = sadd.s32 %s105, 1
      %s107 = scalar_select %p104, %s105, %s106
      %p110 = pneg %p104
      %p111 = scmp.eq.s32.totalorder %s18, 7
      %p112 = por %p110, %p111
      %p113 = scmp.ne.s32.totalorder %s105, %s108
      %p114 = scmp.eq.s32.totalorder %s18, 0
      %p115 = por %p113, %p114
      %p116 = scmp.ne.s32.totalorder %s105, %s108
      %p117 = scmp.eq.s32.totalorder %s23, 7
      %p118 = por %p116, %p117
      %p119 = scmp.ne.s32.totalorder %s108, %s109
      %p120 = scmp.eq.s32.totalorder %s23, 0
      %p121 = por %p119, %p120
      %p122 = scmp.ne.s32.totalorder %s108, %s109
      %p123 = scmp.eq.s32.totalorder %s24, 7
      %p124 = por %p122, %p123
      %p126 = scmp.ne.s32.totalorder %s109, %s125
      %p127 = scmp.eq.s32.totalorder %s24, 0
      %p128 = por %p126, %p127
      %s129 = ssub.s32 %s25, %s44
      %s130 = ssub.s32 %s26, %s40
      %s131 = sor.u32 %s129, %s130
      %p132 = scmp.eq.s32.totalorder %s131, 0
      %s134 = sadd.s32 %s133, 1
      %s135 = scalar_select %p132, %s133, %s134
      %p138 = pneg %p132
      %p139 = scmp.eq.s32.totalorder %s18, 7
      %p140 = por %p138, %p139
      %p141 = scmp.ne.s32.totalorder %s133, %s136
      %p142 = scmp.eq.s32.totalorder %s18, 0
      %p143 = por %p141, %p142
      %p144 = scmp.ne.s32.totalorder %s133, %s136
      %p145 = scmp.eq.s32.totalorder %s23, 7
      %p146 = por %p144, %p145
      %p147 = scmp.ne.s32.totalorder %s136, %s137
      %p148 = scmp.eq.s32.totalorder %s23, 0
      %p149 = por %p147, %p148
      %p150 = scmp.ne.s32.totalorder %s136, %s137
      %p151 = scmp.eq.s32.totalorder %s24, 7
      %p152 = por %p150, %p151
      %p154 = scmp.ne.s32.totalorder %s137, %s153
      %p155 = scmp.eq.s32.totalorder %s24, 0
      %p156 = por %p154, %p155
      %p157 = scmp.le.s32.totalorder 1, %s18
      %p158 = scmp.lt.s32.totalorder %s18, 9
      %p159 = pnand %p157, %p158
      %p160 = pneg %p159
      // Predicated region
      $region9: #{tpu_custom_call.1} parent=5 // pred_check
        _
      $region10: #{tpu_custom_call.1} parent=5 // pred_check_branch
        %162 = sbr.rel (%p159) target = $region12
      $region11: #{tpu_custom_call.1} parent=5 // pred_region
        %s163 = ssub.s32 %s18, 1
      $region12: #{tpu_custom_call.1} parent=5 // pred_fallthru
        _
      %p164 = scmp.lt.s32.totalorder %s18, 8
      // Predicated region
      $region13: #{tpu_custom_call.1} parent=5 // pred_check
        %p165 = pneg %p164
      $region14: #{tpu_custom_call.1} parent=5 // pred_check_branch
        %167 = sbr.rel (%p165) target = $region16
      $region15: #{tpu_custom_call.1} parent=5 // pred_region
        // Predicated region
        $region17: #{tpu_custom_call.1} parent=15 // pred_check
          %p168 = pneg %p59
        $region18: #{tpu_custom_call.1} parent=15 // pred_check_branch
          %170 = sbr.rel (%p168) target = $region20
        $region19: #{tpu_custom_call.1} parent=15 // pred_region
          %s171 = sand.u32 %s49, 1
          %s172 = scalar_lea.sflag [#allocation6], %s171
          %s173 = sand.u32 %s49, 1
          %s174 = smul.addr %s173, 128
          %s175 = scalar_lea.vmem [#allocation5], %s174
          %s176 = smul.u32 16, %s26
          %s178 = ssub.s32 2048, 2048
          %179 = vsyncadd %s172, %s178
          %s180 = smul.addr %s25, 32
          %s181 = sadd.s32 %s176, %s180
          %s182 = smul.addr %s181, 128
          %s183 = scalar_lea.hbm %s0, %s182
          %s184 = sshll.u32 %s175, 4
          %s185 = int_to_ptr.vmem [resolvable:$true] %s184
          %190 = dma.hbm_to_vmem [thread:$0]  %s183, 2048, %s185, %s172, 128, 128, 8
        $region20: #{tpu_custom_call.1} parent=15 // pred_fallthru
          _
        // Predicated region
        $region21: #{tpu_custom_call.1} parent=15 // pred_check
          %p191 = pneg %p87
        $region22: #{tpu_custom_call.1} parent=15 // pred_check_branch
          %193 = sbr.rel (%p191) target = $region24
        $region23: #{tpu_custom_call.1} parent=15 // pred_region
          %s194 = sand.u32 %s18, 1
          %s195 = scalar_lea.sflag [#allocation9], %s194
          %s196 = sand.u32 %s77, 1
          %s197 = smul.addr %s196, 128
          %s198 = scalar_lea.vmem [#allocation8], %s197
          %s199 = smul.u32 16, %s27
          %s201 = ssub.s32 2048, 2048
          %202 = vsyncadd %s195, %s201
          %s203 = smul.addr %s25, 32
          %s204 = sadd.s32 %s199, %s203
          %s205 = smul.addr %s204, 128
          %s206 = scalar_lea.hbm %s1, %s205
          %s207 = sshll.u32 %s198, 4
          %s208 = int_to_ptr.vmem [resolvable:$true] %s207
          %213 = dma.hbm_to_vmem [thread:$0]  %s206, 2048, %s208, %s195, 128, 128, 8
        $region24: #{tpu_custom_call.1} parent=15 // pred_fallthru
          _
        // Predicated region
        $region25: #{tpu_custom_call.1} parent=15 // pred_check
          %p214 = pneg %p115
        $region26: #{tpu_custom_call.1} parent=15 // pred_check_branch
          %216 = sbr.rel (%p214) target = $region28
        $region27: #{tpu_custom_call.1} parent=15 // pred_region
          %s217 = sand.u32 %s18, 1
          %s218 = scalar_lea.sflag [#allocation9], %s217
          %s219 = sand.u32 %s105, 1
          %s220 = smul.addr %s219, 128
          %s221 = scalar_lea.vmem [#allocation10], %s220
          %s222 = smul.u32 16, %s27
          %s224 = ssub.s32 2048, 2048
          %225 = vsyncadd %s218, %s224
          %s226 = smul.addr %s25, 32
          %s227 = sadd.s32 %s222, %s226
          %s228 = smul.addr %s227, 128
          %s229 = scalar_lea.hbm %s2, %s228
          %s230 = sshll.u32 %s221, 4
          %s231 = int_to_ptr.vmem [resolvable:$true] %s230
          %236 = dma.hbm_to_vmem [thread:$0]  %s229, 2048, %s231, %s218, 128, 128, 8
        $region28: #{tpu_custom_call.1} parent=15 // pred_fallthru
          _
      $region16: #{tpu_custom_call.1} parent=5 // pred_fallthru
        _
      %p237 = scmp.le.s32.totalorder 1, %s18
      %p238 = scmp.lt.s32.totalorder %s18, 9
      %p239 = pnand %p237, %p238
      %p240 = pneg %p239
      // Predicated region
      $region29: #{tpu_custom_call.1} parent=5 // pred_check
        _
      $region30: #{tpu_custom_call.1} parent=5 // pred_check_branch
        %242 = sbr.rel (%p239) target = $region32
      $region31: #{tpu_custom_call.1} parent=5 // pred_region
        %s243 = ssub.s32 %s18, 1
        %s244 = sand.u32 %s52, 1
        %s245 = scalar_lea.sflag [#allocation6], %s244
        %s246 = sand.u32 %s52, 1
        %s247 = smul.addr %s246, 128
        %s248 = scalar_lea.vmem [#allocation5], %s247
        // Predicated region
        $region33: #{tpu_custom_call.1} parent=31 // pred_check
          %p249 = pneg %p65
        $region34: #{tpu_custom_call.1} parent=31 // pred_check_branch
          %251 = sbr.rel (%p249) target = $region36
        $region35: #{tpu_custom_call.1} parent=31 // pred_region
          %252 = dma.done %s245, 2048
        $region36: #{tpu_custom_call.1} parent=31 // pred_fallthru
          _
        %s253 = sand.u32 %s23, 1
        %s254 = scalar_lea.sflag [#allocation9], %s253
        %s255 = sand.u32 %s80, 1
        %s256 = smul.addr %s255, 128
        %s257 = scalar_lea.vmem [#allocation8], %s256
        // Predicated region
        $region37: #{tpu_custom_call.1} parent=31 // pred_check
          %p258 = pneg %p93
        $region38: #{tpu_custom_call.1} parent=31 // pred_check_branch
          %260 = sbr.rel (%p258) target = $region40
        $region39: #{tpu_custom_call.1} parent=31 // pred_region
          %261 = dma.done %s254, 2048
        $region40: #{tpu_custom_call.1} parent=31 // pred_fallthru
          _
        %s262 = sand.u32 %s23, 1
        %s263 = scalar_lea.sflag [#allocation9], %s262
        %s264 = sand.u32 %s108, 1
        %s265 = smul.addr %s264, 128
        %s266 = scalar_lea.vmem [#allocation10], %s265
        // Predicated region
        $region41: #{tpu_custom_call.1} parent=31 // pred_check
          %p267 = pneg %p121
        $region42: #{tpu_custom_call.1} parent=31 // pred_check_branch
          %269 = sbr.rel (%p267) target = $region44
        $region43: #{tpu_custom_call.1} parent=31 // pred_region
          %270 = dma.done %s263, 2048
        $region44: #{tpu_custom_call.1} parent=31 // pred_fallthru
          _
        %s271 = sand.u32 %s52, 1
        %s272 = scalar_lea.sflag [#allocation6], %s271
        %s273 = sand.u32 %s52, 1
        %s274 = smul.addr %s273, 128
        %s275 = scalar_lea.vmem [#allocation5], %s274
        %p276 = pneg %p65
        %p277 = pneg %p62
        %s278 = sand.u32 %s23, 1
        %s279 = scalar_lea.sflag [#allocation9], %s278
        %s280 = sand.u32 %s80, 1
        %s281 = smul.addr %s280, 128
        %s282 = scalar_lea.vmem [#allocation8], %s281
        %p283 = pneg %p93
        %p284 = pneg %p90
        %s285 = sand.u32 %s23, 1
        %s286 = scalar_lea.sflag [#allocation9], %s285
        %s287 = sand.u32 %s108, 1
        %s288 = smul.addr %s287, 128
        %s289 = scalar_lea.vmem [#allocation10], %s288
        %p290 = pneg %p121
        %p291 = pneg %p118
        %p292 = pneg %p149
        %p293 = pneg %p146
        %s294 = sand.u32 %s136, 1
        %s295 = scalar_lea.sflag [#allocation7], %s294
        %s296 = sand.u32 %s136, 1
        %s297 = smul.addr %s296, 128
        %s298 = scalar_lea.vmem [#allocation11], %s297
        %s299 = smul.u32 16, %s29
        %s300 = smul.u32 16, %s30
        %s301 = smul.u32 16, %s30
        %s302 = smul.u32 16, %s29
        %p303 = scmp.eq.s32.totalorder %s30, 0
        // Predicated region
        $region45: #{tpu_custom_call.1} parent=31 // pred_check
          %p304 = pneg %p303
        $region46: #{tpu_custom_call.1} parent=31 // pred_check_branch
          %306 = sbr.rel (%p304) target = $region48
        $region47: #{tpu_custom_call.1} parent=31 // pred_region
          %vm307 = vcmask 7168
          %308 = vst.msk [vmem:[#allocation2] sm:$0xff] %vm307, -inf
          %309 = vst.msk [vmem:[#allocation2 + $0x8] sm:$0xff] %vm307, -inf
          %310 = vst.msk [vmem:[#allocation2 + $0x10] sm:$0xff] %vm307, -inf
          %311 = vst.msk [vmem:[#allocation2 + $0x18] sm:$0xff] %vm307, -inf
          %312 = vst.msk [vmem:[#allocation2 + $0x20] sm:$0xff] %vm307, -inf
          %313 = vst.msk [vmem:[#allocation2 + $0x28] sm:$0xff] %vm307, -inf
          %314 = vst.msk [vmem:[#allocation2 + $0x30] sm:$0xff] %vm307, -inf
          %315 = vst.msk [vmem:[#allocation2 + $0x38] sm:$0xff] %vm307, -inf
          %316 = vst.msk [vmem:[#allocation2 + $0x40] sm:$0xff] %vm307, -inf
          %317 = vst.msk [vmem:[#allocation2 + $0x48] sm:$0xff] %vm307, -inf
          %318 = vst.msk [vmem:[#allocation2 + $0x50] sm:$0xff] %vm307, -inf
          %319 = vst.msk [vmem:[#allocation2 + $0x58] sm:$0xff] %vm307, -inf
          %320 = vst.msk [vmem:[#allocation2 + $0x60] sm:$0xff] %vm307, -inf
          %321 = vst.msk [vmem:[#allocation2 + $0x68] sm:$0xff] %vm307, -inf
          %322 = vst.msk [vmem:[#allocation2 + $0x70] sm:$0xff] %vm307, -inf
          %323 = vst.msk [vmem:[#allocation2 + $0x78] sm:$0xff] %vm307, -inf
          %324 = vst.msk [vmem:[#allocation3] sm:$0xff] %vm307, 0.0
          %325 = vst.msk [vmem:[#allocation3 + $0x8] sm:$0xff] %vm307, 0.0
          %326 = vst.msk [vmem:[#allocation3 + $0x10] sm:$0xff] %vm307, 0.0
          %327 = vst.msk [vmem:[#allocation3 + $0x18] sm:$0xff] %vm307, 0.0
          %328 = vst.msk [vmem:[#allocation3 + $0x20] sm:$0xff] %vm307, 0.0
          %329 = vst.msk [vmem:[#allocation3 + $0x28] sm:$0xff] %vm307, 0.0
          %330 = vst.msk [vmem:[#allocation3 + $0x30] sm:$0xff] %vm307, 0.0
          %331 = vst.msk [vmem:[#allocation3 + $0x38] sm:$0xff] %vm307, 0.0
          %332 = vst.msk [vmem:[#allocation3 + $0x40] sm:$0xff] %vm307, 0.0
          %333 = vst.msk [vmem:[#allocation3 + $0x48] sm:$0xff] %vm307, 0.0
          %334 = vst.msk [vmem:[#allocation3 + $0x50] sm:$0xff] %vm307, 0.0
          %335 = vst.msk [vmem:[#allocation3 + $0x58] sm:$0xff] %vm307, 0.0
          %336 = vst.msk [vmem:[#allocation3 + $0x60] sm:$0xff] %vm307, 0.0
          %337 = vst.msk [vmem:[#allocation3 + $0x68] sm:$0xff] %vm307, 0.0
          %338 = vst.msk [vmem:[#allocation3 + $0x70] sm:$0xff] %vm307, 0.0
          %339 = vst.msk [vmem:[#allocation3 + $0x78] sm:$0xff] %vm307, 0.0
          %340 = vst [vmem:[#allocation4] sm:$0xff] 0.0
          %341 = vst [vmem:[#allocation4 + $0x8] sm:$0xff] 0.0
          %342 = vst [vmem:[#allocation4 + $0x10] sm:$0xff] 0.0
          %343 = vst [vmem:[#allocation4 + $0x18] sm:$0xff] 0.0
          %344 = vst [vmem:[#allocation4 + $0x20] sm:$0xff] 0.0
          %345 = vst [vmem:[#allocation4 + $0x28] sm:$0xff] 0.0
          %346 = vst [vmem:[#allocation4 + $0x30] sm:$0xff] 0.0
          %347 = vst [vmem:[#allocation4 + $0x38] sm:$0xff] 0.0
          %348 = vst [vmem:[#allocation4 + $0x40] sm:$0xff] 0.0
          %349 = vst [vmem:[#allocation4 + $0x48] sm:$0xff] 0.0
          %350 = vst [vmem:[#allocation4 + $0x50] sm:$0xff] 0.0
          %351 = vst [vmem:[#allocation4 + $0x58] sm:$0xff] 0.0
          %352 = vst [vmem:[#allocation4 + $0x60] sm:$0xff] 0.0
          %353 = vst [vmem:[#allocation4 + $0x68] sm:$0xff] 0.0
          %354 = vst [vmem:[#allocation4 + $0x70] sm:$0xff] 0.0
          %355 = vst [vmem:[#allocation4 + $0x78] sm:$0xff] 0.0
        $region48: #{tpu_custom_call.1} parent=31 // pred_fallthru
          _
        %v356 = vld [vmem:[%s248] sm:$0xff]
        %v357 = vld [vmem:[%s248 + $0x8] sm:$0xff]
        %v358 = vld [vmem:[%s248 + $0x10] sm:$0xff]
        %v359 = vld [vmem:[%s248 + $0x18] sm:$0xff]
        %v360 = vld [vmem:[%s248 + $0x20] sm:$0xff]
        %v361 = vld [vmem:[%s248 + $0x28] sm:$0xff]
        %v362 = vld [vmem:[%s248 + $0x30] sm:$0xff]
        %v363 = vld [vmem:[%s248 + $0x38] sm:$0xff]
        %v364 = vld [vmem:[%s248 + $0x40] sm:$0xff]
        %v365 = vld [vmem:[%s248 + $0x48] sm:$0xff]
        %v366 = vld [vmem:[%s248 + $0x50] sm:$0xff]
        %v367 = vld [vmem:[%s248 + $0x58] sm:$0xff]
        %v368 = vld [vmem:[%s248 + $0x60] sm:$0xff]
        %v369 = vld [vmem:[%s248 + $0x68] sm:$0xff]
        %v370 = vld [vmem:[%s248 + $0x70] sm:$0xff]
        %v371 = vld [vmem:[%s248 + $0x78] sm:$0xff]
        %v372 = vmul.f32 %v356, 0.088388346
        %v373 = vmul.f32 %v357, 0.088388346
        %v374 = vmul.f32 %v358, 0.088388346
        %v375 = vmul.f32 %v359, 0.088388346
        %v376 = vmul.f32 %v360, 0.088388346
        %v377 = vmul.f32 %v361, 0.088388346
        %v378 = vmul.f32 %v362, 0.088388346
        %v379 = vmul.f32 %v363, 0.088388346
        %v380 = vmul.f32 %v364, 0.088388346
        %v381 = vmul.f32 %v365, 0.088388346
        %v382 = vmul.f32 %v366, 0.088388346
        %v383 = vmul.f32 %v367, 0.088388346
        %v384 = vmul.f32 %v368, 0.088388346
        %v385 = vmul.f32 %v369, 0.088388346
        %v386 = vmul.f32 %v370, 0.088388346
        %v387 = vmul.f32 %v371, 0.088388346
        %v388 = vld [vmem:[%s257] sm:$0xff]
        %v389 = vld [vmem:[%s257 + $0x8] sm:$0xff]
        %v390 = vld [vmem:[%s257 + $0x10] sm:$0xff]
        %v391 = vld [vmem:[%s257 + $0x18] sm:$0xff]
        %v392 = vld [vmem:[%s257 + $0x20] sm:$0xff]
        %v393 = vld [vmem:[%s257 + $0x28] sm:$0xff]
        %v394 = vld [vmem:[%s257 + $0x30] sm:$0xff]
        %v395 = vld [vmem:[%s257 + $0x38] sm:$0xff]
        %v396 = vld [vmem:[%s257 + $0x40] sm:$0xff]
        %v397 = vld [vmem:[%s257 + $0x48] sm:$0xff]
        %v398 = vld [vmem:[%s257 + $0x50] sm:$0xff]
        %v399 = vld [vmem:[%s257 + $0x58] sm:$0xff]
        %v400 = vld [vmem:[%s257 + $0x60] sm:$0xff]
        %v401 = vld [vmem:[%s257 + $0x68] sm:$0xff]
        %v402 = vld [vmem:[%s257 + $0x70] sm:$0xff]
        %v403 = vld [vmem:[%s257 + $0x78] sm:$0xff]
        %v404 = vld [vmem:[%s266] sm:$0xff]
        %v405 = vld [vmem:[%s266 + $0x8] sm:$0xff]
        %v406 = vld [vmem:[%s266 + $0x10] sm:$0xff]
        %v407 = vld [vmem:[%s266 + $0x18] sm:$0xff]
        %v408 = vld [vmem:[%s266 + $0x20] sm:$0xff]
        %v409 = vld [vmem:[%s266 + $0x28] sm:$0xff]
        %v410 = vld [vmem:[%s266 + $0x30] sm:$0xff]
        %v411 = vld [vmem:[%s266 + $0x38] sm:$0xff]
        %v412 = vld [vmem:[%s266 + $0x40] sm:$0xff]
        %v413 = vld [vmem:[%s266 + $0x48] sm:$0xff]
        %v414 = vld [vmem:[%s266 + $0x50] sm:$0xff]
        %v415 = vld [vmem:[%s266 + $0x58] sm:$0xff]
        %v416 = vld [vmem:[%s266 + $0x60] sm:$0xff]
        %v417 = vld [vmem:[%s266 + $0x68] sm:$0xff]
        %v418 = vld [vmem:[%s266 + $0x70] sm:$0xff]
        %v419 = vld [vmem:[%s266 + $0x78] sm:$0xff]
        %420 = vmatprep.subr.mxu0 0.0
        %421 = vmatpush1.xpose.msra.mxu0 %v403
        %422 = vmatprep.subr.mxu0 0.0
        %423 = vmatpush1.xpose.msra.mxu0 %v402
        %424 = vmatprep.subr.mxu0 0.0
        %425 = vmatpush1.xpose.msra.mxu0 %v401
        %426 = vmatprep.subr.mxu0 0.0
        %427 = vmatpush1.xpose.msra.mxu0 %v400
        %428 = vmatprep.subr.mxu0 0.0
        %429 = vmatpush1.xpose.msra.mxu0 %v399
        %430 = vmatprep.subr.mxu0 0.0
        %431 = vmatpush1.xpose.msra.mxu0 %v398
        %432 = vmatprep.subr.mxu0 0.0
        %433 = vmatpush1.xpose.msra.mxu0 %v397
        %434 = vmatprep.subr.mxu0 0.0
        %435 = vmatpush1.xpose.msra.mxu0 %v396
        %436 = vmatprep.subr.mxu0 0.0
        %437 = vmatpush1.xpose.msra.mxu0 %v395
        %438 = vmatprep.subr.mxu0 0.0
        %439 = vmatpush1.xpose.msra.mxu0 %v394
        %440 = vmatprep.subr.mxu0 0.0
        %441 = vmatpush1.xpose.msra.mxu0 %v393
        %442 = vmatprep.subr.mxu0 0.0
        %443 = vmatpush1.xpose.msra.mxu0 %v392
        %444 = vmatprep.subr.mxu0 0.0
        %445 = vmatpush1.xpose.msra.mxu0 %v391
        %446 = vmatprep.subr.mxu0 0.0
        %447 = vmatpush1.xpose.msra.mxu0 %v390
        %448 = vmatprep.subr.mxu0 0.0
        %449 = vmatpush1.xpose.msra.mxu0 %v389
        %450 = vmatprep.subr.mxu0 0.0
        %451 = vmatpush1.xpose.msra.mxu0 %v388
        %452 = vmatprep.subr.mxu0 0.0
        %453 = vmatpush2.xpose.msra.mxu0 0.0
        %454 = vmatprep.subr.mxu0 0.0
        %455 = vmatpush2.xpose.msra.mxu0 0.0
        %456 = vmatprep.subr.mxu0 0.0
        %457 = vmatpush2.xpose.msra.mxu0 0.0
        %458 = vmatprep.subr.mxu0 0.0
        %459 = vmatpush2.xpose.msra.mxu0 0.0
        %460 = vmatprep.subr.mxu0 0.0
        %461 = vmatpush2.xpose.msra.mxu0 0.0
        %462 = vmatprep.subr.mxu0 0.0
        %463 = vmatpush2.xpose.msra.mxu0 0.0
        %464 = vmatprep.subr.mxu0 0.0
        %465 = vmatpush2.xpose.msra.mxu0 0.0
        %466 = vmatprep.subr.mxu0 0.0
        %467 = vmatpush2.xpose.msra.mxu0 0.0
        %468 = vmatprep.subr.mxu0 0.0
        %469 = vmatpush2.xpose.msra.mxu0 0.0
        %470 = vmatprep.subr.mxu0 0.0
        %471 = vmatpush2.xpose.msra.mxu0 0.0
        %472 = vmatprep.subr.mxu0 0.0
        %473 = vmatpush2.xpose.msra.mxu0 0.0
        %474 = vmatprep.subr.mxu0 0.0
        %475 = vmatpush2.xpose.msra.mxu0 0.0
        %476 = vmatprep.subr.mxu0 0.0
        %477 = vmatpush2.xpose.msra.mxu0 0.0
        %478 = vmatprep.subr.mxu0 0.0
        %479 = vmatpush2.xpose.msra.mxu0 0.0
        %480 = vmatprep.subr.mxu0 0.0
        %481 = vmatpush2.xpose.msra.mxu0 0.0
        %482 = vmatprep.subr.mxu0 0.0
        %483 = vmatpush2.xpose.msra.mxu0 0.0
        %484 = vmatprep.mubr.f32.mxu0 0.0
        %485 = vmatmul.mubr.f32.gmra.mxu0 %v372
        %v486 = vpop.f32.mrf.mxu0
        %v487 = vadd.f32 0.0, %v486
        %v488 = vpop.f32.mrf.mxu0
        %489 = vmatprep.mubr.f32.mxu0 0.0
        %490 = vmatmul.mubr.f32.gmra.mxu0 %v373
        %v491 = vpop.f32.mrf.mxu0
        %v492 = vadd.f32 0.0, %v491
        %v493 = vpop.f32.mrf.mxu0
        %494 = vmatprep.mubr.f32.mxu0 0.0
        %495 = vmatmul.mubr.f32.gmra.mxu0 %v374
        %v496 = vpop.f32.mrf.mxu0
        %v497 = vadd.f32 0.0, %v496
        %v498 = vpop.f32.mrf.mxu0
        %499 = vmatprep.mubr.f32.mxu0 0.0
        %500 = vmatmul.mubr.f32.gmra.mxu0 %v375
        %v501 = vpop.f32.mrf.mxu0
        %v502 = vadd.f32 0.0, %v501
        %v503 = vpop.f32.mrf.mxu0
        %504 = vmatprep.mubr.f32.mxu0 0.0
        %505 = vmatmul.mubr.f32.gmra.mxu0 %v376
        %v506 = vpop.f32.mrf.mxu0
        %v507 = vadd.f32 0.0, %v506
        %v508 = vpop.f32.mrf.mxu0
        %509 = vmatprep.mubr.f32.mxu0 0.0
        %510 = vmatmul.mubr.f32.gmra.mxu0 %v377
        %v511 = vpop.f32.mrf.mxu0
        %v512 = vadd.f32 0.0, %v511
        %v513 = vpop.f32.mrf.mxu0
        %514 = vmatprep.mubr.f32.mxu0 0.0
        %515 = vmatmul.mubr.f32.gmra.mxu0 %v378
        %v516 = vpop.f32.mrf.mxu0
        %v517 = vadd.f32 0.0, %v516
        %v518 = vpop.f32.mrf.mxu0
        %519 = vmatprep.mubr.f32.mxu0 0.0
        %520 = vmatmul.mubr.f32.gmra.mxu0 %v379
        %v521 = vpop.f32.mrf.mxu0
        %v522 = vadd.f32 0.0, %v521
        %v523 = vpop.f32.mrf.mxu0
        %524 = vmatprep.mubr.f32.mxu0 0.0
        %525 = vmatmul.mubr.f32.gmra.mxu0 %v380
        %v526 = vpop.f32.mrf.mxu0
        %v527 = vadd.f32 0.0, %v526
        %v528 = vpop.f32.mrf.mxu0
        %529 = vmatprep.mubr.f32.mxu0 0.0
        %530 = vmatmul.mubr.f32.gmra.mxu0 %v381
        %v531 = vpop.f32.mrf.mxu0
        %v532 = vadd.f32 0.0, %v531
        %v533 = vpop.f32.mrf.mxu0
        %534 = vmatprep.mubr.f32.mxu0 0.0
        %535 = vmatmul.mubr.f32.gmra.mxu0 %v382
        %v536 = vpop.f32.mrf.mxu0
        %v537 = vadd.f32 0.0, %v536
        %v538 = vpop.f32.mrf.mxu0
        %539 = vmatprep.mubr.f32.mxu0 0.0
        %540 = vmatmul.mubr.f32.gmra.mxu0 %v383
        %v541 = vpop.f32.mrf.mxu0
        %v542 = vadd.f32 0.0, %v541
        %v543 = vpop.f32.mrf.mxu0
        %544 = vmatprep.mubr.f32.mxu0 0.0
        %545 = vmatmul.mubr.f32.gmra.mxu0 %v384
        %v546 = vpop.f32.mrf.mxu0
        %v547 = vadd.f32 0.0, %v546
        %v548 = vpop.f32.mrf.mxu0
        %549 = vmatprep.mubr.f32.mxu0 0.0
        %550 = vmatmul.mubr.f32.gmra.mxu0 %v385
        %v551 = vpop.f32.mrf.mxu0
        %v552 = vadd.f32 0.0, %v551
        %v553 = vpop.f32.mrf.mxu0
        %554 = vmatprep.mubr.f32.mxu0 0.0
        %555 = vmatmul.mubr.f32.gmra.mxu0 %v386
        %v556 = vpop.f32.mrf.mxu0
        %v557 = vadd.f32 0.0, %v556
        %v558 = vpop.f32.mrf.mxu0
        %559 = vmatprep.mubr.f32.mxu0 0.0
        %560 = vmatmul.mubr.f32.gmra.mxu0 %v387
        %v561 = vpop.f32.mrf.mxu0
        %v562 = vadd.f32 0.0, %v561
        %v563 = vpop.f32.mrf.mxu0
        %564 = vdwg.mxu0
        %v565 = vld [vmem:[#allocation2] sm:$0xff]
        %v566 = vld [vmem:[#allocation2 + $0x8] sm:$0xff]
        %v567 = vld [vmem:[#allocation2 + $0x10] sm:$0xff]
        %v568 = vld [vmem:[#allocation2 + $0x18] sm:$0xff]
        %v569 = vld [vmem:[#allocation2 + $0x20] sm:$0xff]
        %v570 = vld [vmem:[#allocation2 + $0x28] sm:$0xff]
        %v571 = vld [vmem:[#allocation2 + $0x30] sm:$0xff]
        %v572 = vld [vmem:[#allocation2 + $0x38] sm:$0xff]
        %v573 = vld [vmem:[#allocation2 + $0x40] sm:$0xff]
        %v574 = vld [vmem:[#allocation2 + $0x48] sm:$0xff]
        %v575 = vld [vmem:[#allocation2 + $0x50] sm:$0xff]
        %v576 = vld [vmem:[#allocation2 + $0x58] sm:$0xff]
        %v577 = vld [vmem:[#allocation2 + $0x60] sm:$0xff]
        %v578 = vld [vmem:[#allocation2 + $0x68] sm:$0xff]
        %v579 = vld [vmem:[#allocation2 + $0x70] sm:$0xff]
        %v580 = vld [vmem:[#allocation2 + $0x78] sm:$0xff]
        %581 = vmax.xlane.f32.xlu0 %v487
        %v582 = vpop.xlane.xlu0 %581
        %583 = vmax.xlane.f32.xlu0 %v492
        %v584 = vpop.xlane.xlu0 %583
        %585 = vmax.xlane.f32.xlu0 %v497
        %v586 = vpop.xlane.xlu0 %585
        %587 = vmax.xlane.f32.xlu0 %v502
        %v588 = vpop.xlane.xlu0 %587
        %589 = vmax.xlane.f32.xlu0 %v507
        %v590 = vpop.xlane.xlu0 %589
        %591 = vmax.xlane.f32.xlu0 %v512
        %v592 = vpop.xlane.xlu0 %591
        %593 = vmax.xlane.f32.xlu0 %v517
        %v594 = vpop.xlane.xlu0 %593
        %595 = vmax.xlane.f32.xlu0 %v522
        %v596 = vpop.xlane.xlu0 %595
        %597 = vmax.xlane.f32.xlu0 %v527
        %v598 = vpop.xlane.xlu0 %597
        %599 = vmax.xlane.f32.xlu0 %v532
        %v600 = vpop.xlane.xlu0 %599
        %601 = vmax.xlane.f32.xlu0 %v537
        %v602 = vpop.xlane.xlu0 %601
        %603 = vmax.xlane.f32.xlu0 %v542
        %v604 = vpop.xlane.xlu0 %603
        %605 = vmax.xlane.f32.xlu0 %v547
        %v606 = vpop.xlane.xlu0 %605
        %607 = vmax.xlane.f32.xlu0 %v552
        %v608 = vpop.xlane.xlu0 %607
        %609 = vmax.xlane.f32.xlu0 %v557
        %v610 = vpop.xlane.xlu0 %609
        %611 = vmax.xlane.f32.xlu0 %v562
        %v612 = vpop.xlane.xlu0 %611
        %v613 = vmax.f32 %v565, %v582
        %v614 = vmax.f32 %v566, %v584
        %v615 = vmax.f32 %v567, %v586
        %v616 = vmax.f32 %v568, %v588
        %v617 = vmax.f32 %v569, %v590
        %v618 = vmax.f32 %v570, %v592
        %v619 = vmax.f32 %v571, %v594
        %v620 = vmax.f32 %v572, %v596
        %v621 = vmax.f32 %v573, %v598
        %v622 = vmax.f32 %v574, %v600
        %v623 = vmax.f32 %v575, %v602
        %v624 = vmax.f32 %v576, %v604
        %v625 = vmax.f32 %v577, %v606
        %v626 = vmax.f32 %v578, %v608
        %v627 = vmax.f32 %v579, %v610
        %v628 = vmax.f32 %v580, %v612
        %v629 = vsub.f32 %v565, %v613
        %v630 = vsub.f32 %v566, %v614
        %v631 = vsub.f32 %v567, %v615
        %v632 = vsub.f32 %v568, %v616
        %v633 = vsub.f32 %v569, %v617
        %v634 = vsub.f32 %v570, %v618
        %v635 = vsub.f32 %v571, %v619
        %v636 = vsub.f32 %v572, %v620
        %v637 = vsub.f32 %v573, %v621
        %v638 = vsub.f32 %v574, %v622
        %v639 = vsub.f32 %v575, %v623
        %v640 = vsub.f32 %v576, %v624
        %v641 = vsub.f32 %v577, %v625
        %v642 = vsub.f32 %v578, %v626
        %v643 = vsub.f32 %v579, %v627
        %v644 = vsub.f32 %v580, %v628
        %v645 = vmul.f32 %v629, 1.442695
        %v646 = vpow.pop %v645
        %v647 = vmul.f32 %v630, 1.442695
        %v648 = vpow.pop %v647
        %v649 = vmul.f32 %v631, 1.442695
        %v650 = vpow.pop %v649
        %v651 = vmul.f32 %v632, 1.442695
        %v652 = vpow.pop %v651
        %v653 = vmul.f32 %v633, 1.442695
        %v654 = vpow.pop %v653
        %v655 = vmul.f32 %v634, 1.442695
        %v656 = vpow.pop %v655
        %v657 = vmul.f32 %v635, 1.442695
        %v658 = vpow.pop %v657
        %v659 = vmul.f32 %v636, 1.442695
        %v660 = vpow.pop %v659
        %v661 = vmul.f32 %v637, 1.442695
        %v662 = vpow.pop %v661
        %v663 = vmul.f32 %v638, 1.442695
        %v664 = vpow.pop %v663
        %v665 = vmul.f32 %v639, 1.442695
        %v666 = vpow.pop %v665
        %v667 = vmul.f32 %v640, 1.442695
        %v668 = vpow.pop %v667
        %v669 = vmul.f32 %v641, 1.442695
        %v670 = vpow.pop %v669
        %v671 = vmul.f32 %v642, 1.442695
        %v672 = vpow.pop %v671
        %v673 = vmul.f32 %v643, 1.442695
        %v674 = vpow.pop %v673
        %v675 = vmul.f32 %v644, 1.442695
        %v676 = vpow.pop %v675
        %678 = vset.pattern.permute.xlu0 0
        %679 = vperm.xlu0 %678, %v613
        %v680 = vpop.permute.xlu0 %679
        %683 = vset.pattern.permute.xlu0 0
        %684 = vperm.xlu0 %683, %v614
        %v685 = vpop.permute.xlu0 %684
        %688 = vset.pattern.permute.xlu0 0
        %689 = vperm.xlu0 %688, %v615
        %v690 = vpop.permute.xlu0 %689
        %693 = vset.pattern.permute.xlu0 0
        %694 = vperm.xlu0 %693, %v616
        %v695 = vpop.permute.xlu0 %694
        %698 = vset.pattern.permute.xlu0 0
        %699 = vperm.xlu0 %698, %v617
        %v700 = vpop.permute.xlu0 %699
        %703 = vset.pattern.permute.xlu0 0
        %704 = vperm.xlu0 %703, %v618
        %v705 = vpop.permute.xlu0 %704
        %708 = vset.pattern.permute.xlu0 0
        %709 = vperm.xlu0 %708, %v619
        %v710 = vpop.permute.xlu0 %709
        %713 = vset.pattern.permute.xlu0 0
        %714 = vperm.xlu0 %713, %v620
        %v715 = vpop.permute.xlu0 %714
        %718 = vset.pattern.permute.xlu0 0
        %719 = vperm.xlu0 %718, %v621
        %v720 = vpop.permute.xlu0 %719
        %723 = vset.pattern.permute.xlu0 0
        %724 = vperm.xlu0 %723, %v622
        %v725 = vpop.permute.xlu0 %724
        %728 = vset.pattern.permute.xlu0 0
        %729 = vperm.xlu0 %728, %v623
        %v730 = vpop.permute.xlu0 %729
        %733 = vset.pattern.permute.xlu0 0
        %734 = vperm.xlu0 %733, %v624
        %v735 = vpop.permute.xlu0 %734
        %738 = vset.pattern.permute.xlu0 0
        %739 = vperm.xlu0 %738, %v625
        %v740 = vpop.permute.xlu0 %739
        %743 = vset.pattern.permute.xlu0 0
        %744 = vperm.xlu0 %743, %v626
        %v745 = vpop.permute.xlu0 %744
        %748 = vset.pattern.permute.xlu0 0
        %749 = vperm.xlu0 %748, %v627
        %v750 = vpop.permute.xlu0 %749
        %753 = vset.pattern.permute.xlu0 0
        %754 = vperm.xlu0 %753, %v628
        %v755 = vpop.permute.xlu0 %754
        %v757 = vsub.f32 %v487, %v680
        %v758 = vsub.f32 %v492, %v685
        %v759 = vsub.f32 %v497, %v690
        %v760 = vsub.f32 %v502, %v695
        %v761 = vsub.f32 %v507, %v700
        %v762 = vsub.f32 %v512, %v705
        %v763 = vsub.f32 %v517, %v710
        %v764 = vsub.f32 %v522, %v715
        %v765 = vsub.f32 %v527, %v720
        %v766 = vsub.f32 %v532, %v725
        %v767 = vsub.f32 %v537, %v730
        %v768 = vsub.f32 %v542, %v735
        %v769 = vsub.f32 %v547, %v740
        %v770 = vsub.f32 %v552, %v745
        %v771 = vsub.f32 %v557, %v750
        %v772 = vsub.f32 %v562, %v755
        %v773 = vmul.f32 %v757, 1.442695
        %v774 = vpow.pop %v773
        %v775 = vmul.f32 %v758, 1.442695
        %v776 = vpow.pop %v775
        %v777 = vmul.f32 %v759, 1.442695
        %v778 = vpow.pop %v777
        %v779 = vmul.f32 %v760, 1.442695
        %v780 = vpow.pop %v779
        %v781 = vmul.f32 %v761, 1.442695
        %v782 = vpow.pop %v781
        %v783 = vmul.f32 %v762, 1.442695
        %v784 = vpow.pop %v783
        %v785 = vmul.f32 %v763, 1.442695
        %v786 = vpow.pop %v785
        %v787 = vmul.f32 %v764, 1.442695
        %v788 = vpow.pop %v787
        %v789 = vmul.f32 %v765, 1.442695
        %v790 = vpow.pop %v789
        %v791 = vmul.f32 %v766, 1.442695
        %v792 = vpow.pop %v791
        %v793 = vmul.f32 %v767, 1.442695
        %v794 = vpow.pop %v793
        %v795 = vmul.f32 %v768, 1.442695
        %v796 = vpow.pop %v795
        %v797 = vmul.f32 %v769, 1.442695
        %v798 = vpow.pop %v797
        %v799 = vmul.f32 %v770, 1.442695
        %v800 = vpow.pop %v799
        %v801 = vmul.f32 %v771, 1.442695
        %v802 = vpow.pop %v801
        %v803 = vmul.f32 %v772, 1.442695
        %v804 = vpow.pop %v803
        %v805 = vld [vmem:[#allocation3] sm:$0xff]
        %v806 = vld [vmem:[#allocation3 + $0x8] sm:$0xff]
        %v807 = vld [vmem:[#allocation3 + $0x10] sm:$0xff]
        %v808 = vld [vmem:[#allocation3 + $0x18] sm:$0xff]
        %v809 = vld [vmem:[#allocation3 + $0x20] sm:$0xff]
        %v810 = vld [vmem:[#allocation3 + $0x28] sm:$0xff]
        %v811 = vld [vmem:[#allocation3 + $0x30] sm:$0xff]
        %v812 = vld [vmem:[#allocation3 + $0x38] sm:$0xff]
        %v813 = vld [vmem:[#allocation3 + $0x40] sm:$0xff]
        %v814 = vld [vmem:[#allocation3 + $0x48] sm:$0xff]
        %v815 = vld [vmem:[#allocation3 + $0x50] sm:$0xff]
        %v816 = vld [vmem:[#allocation3 + $0x58] sm:$0xff]
        %v817 = vld [vmem:[#allocation3 + $0x60] sm:$0xff]
        %v818 = vld [vmem:[#allocation3 + $0x68] sm:$0xff]
        %v819 = vld [vmem:[#allocation3 + $0x70] sm:$0xff]
        %v820 = vld [vmem:[#allocation3 + $0x78] sm:$0xff]
        %v821 = vmul.f32 %v646, %v805
        %v822 = vmul.f32 %v648, %v806
        %v823 = vmul.f32 %v650, %v807
        %v824 = vmul.f32 %v652, %v808
        %v825 = vmul.f32 %v654, %v809
        %v826 = vmul.f32 %v656, %v810
        %v827 = vmul.f32 %v658, %v811
        %v828 = vmul.f32 %v660, %v812
        %v829 = vmul.f32 %v662, %v813
        %v830 = vmul.f32 %v664, %v814
        %v831 = vmul.f32 %v666, %v815
        %v832 = vmul.f32 %v668, %v816
        %v833 = vmul.f32 %v670, %v817
        %v834 = vmul.f32 %v672, %v818
        %v835 = vmul.f32 %v674, %v819
        %v836 = vmul.f32 %v676, %v820
        %837 = vadd.xlane.f32.xlu0 %v774
        %v838 = vpop.xlane.xlu0 %837
        %839 = vadd.xlane.f32.xlu0 %v776
        %v840 = vpop.xlane.xlu0 %839
        %841 = vadd.xlane.f32.xlu0 %v778
        %v842 = vpop.xlane.xlu0 %841
        %843 = vadd.xlane.f32.xlu0 %v780
        %v844 = vpop.xlane.xlu0 %843
        %845 = vadd.xlane.f32.xlu0 %v782
        %v846 = vpop.xlane.xlu0 %845
        %847 = vadd.xlane.f32.xlu0 %v784
        %v848 = vpop.xlane.xlu0 %847
        %849 = vadd.xlane.f32.xlu0 %v786
        %v850 = vpop.xlane.xlu0 %849
        %851 = vadd.xlane.f32.xlu0 %v788
        %v852 = vpop.xlane.xlu0 %851
        %853 = vadd.xlane.f32.xlu0 %v790
        %v854 = vpop.xlane.xlu0 %853
        %855 = vadd.xlane.f32.xlu0 %v792
        %v856 = vpop.xlane.xlu0 %855
        %857 = vadd.xlane.f32.xlu0 %v794
        %v858 = vpop.xlane.xlu0 %857
        %859 = vadd.xlane.f32.xlu0 %v796
        %v860 = vpop.xlane.xlu0 %859
        %861 = vadd.xlane.f32.xlu0 %v798
        %v862 = vpop.xlane.xlu0 %861
        %863 = vadd.xlane.f32.xlu0 %v800
        %v864 = vpop.xlane.xlu0 %863
        %865 = vadd.xlane.f32.xlu0 %v802
        %v866 = vpop.xlane.xlu0 %865
        %867 = vadd.xlane.f32.xlu0 %v804
        %v868 = vpop.xlane.xlu0 %867
        %v869 = vadd.f32 %v821, %v838
        %v870 = vadd.f32 %v822, %v840
        %v871 = vadd.f32 %v823, %v842
        %v872 = vadd.f32 %v824, %v844
        %v873 = vadd.f32 %v825, %v846
        %v874 = vadd.f32 %v826, %v848
        %v875 = vadd.f32 %v827, %v850
        %v876 = vadd.f32 %v828, %v852
        %v877 = vadd.f32 %v829, %v854
        %v878 = vadd.f32 %v830, %v856
        %v879 = vadd.f32 %v831, %v858
        %v880 = vadd.f32 %v832, %v860
        %v881 = vadd.f32 %v833, %v862
        %v882 = vadd.f32 %v834, %v864
        %v883 = vadd.f32 %v835, %v866
        %v884 = vadd.f32 %v836, %v868
        %vm885 = vcmask 7168
        %886 = vst.msk [vmem:[#allocation3] sm:$0xff] %vm885, %v869
        %887 = vst.msk [vmem:[#allocation3 + $0x8] sm:$0xff] %vm885, %v870
        %888 = vst.msk [vmem:[#allocation3 + $0x10] sm:$0xff] %vm885, %v871
        %889 = vst.msk [vmem:[#allocation3 + $0x18] sm:$0xff] %vm885, %v872
        %890 = vst.msk [vmem:[#allocation3 + $0x20] sm:$0xff] %vm885, %v873
        %891 = vst.msk [vmem:[#allocation3 + $0x28] sm:$0xff] %vm885, %v874
        %892 = vst.msk [vmem:[#allocation3 + $0x30] sm:$0xff] %vm885, %v875
        %893 = vst.msk [vmem:[#allocation3 + $0x38] sm:$0xff] %vm885, %v876
        %894 = vst.msk [vmem:[#allocation3 + $0x40] sm:$0xff] %vm885, %v877
        %895 = vst.msk [vmem:[#allocation3 + $0x48] sm:$0xff] %vm885, %v878
        %896 = vst.msk [vmem:[#allocation3 + $0x50] sm:$0xff] %vm885, %v879
        %897 = vst.msk [vmem:[#allocation3 + $0x58] sm:$0xff] %vm885, %v880
        %898 = vst.msk [vmem:[#allocation3 + $0x60] sm:$0xff] %vm885, %v881
        %899 = vst.msk [vmem:[#allocation3 + $0x68] sm:$0xff] %vm885, %v882
        %900 = vst.msk [vmem:[#allocation3 + $0x70] sm:$0xff] %vm885, %v883
        %901 = vst.msk [vmem:[#allocation3 + $0x78] sm:$0xff] %vm885, %v884
        %v902 = vld [vmem:[#allocation4] sm:$0xff]
        %v903 = vld [vmem:[#allocation4 + $0x8] sm:$0xff]
        %v904 = vld [vmem:[#allocation4 + $0x10] sm:$0xff]
        %v905 = vld [vmem:[#allocation4 + $0x18] sm:$0xff]
        %v906 = vld [vmem:[#allocation4 + $0x20] sm:$0xff]
        %v907 = vld [vmem:[#allocation4 + $0x28] sm:$0xff]
        %v908 = vld [vmem:[#allocation4 + $0x30] sm:$0xff]
        %v909 = vld [vmem:[#allocation4 + $0x38] sm:$0xff]
        %v910 = vld [vmem:[#allocation4 + $0x40] sm:$0xff]
        %v911 = vld [vmem:[#allocation4 + $0x48] sm:$0xff]
        %v912 = vld [vmem:[#allocation4 + $0x50] sm:$0xff]
        %v913 = vld [vmem:[#allocation4 + $0x58] sm:$0xff]
        %v914 = vld [vmem:[#allocation4 + $0x60] sm:$0xff]
        %v915 = vld [vmem:[#allocation4 + $0x68] sm:$0xff]
        %v916 = vld [vmem:[#allocation4 + $0x70] sm:$0xff]
        %v917 = vld [vmem:[#allocation4 + $0x78] sm:$0xff]
        %919 = vset.pattern.permute.xlu0 0
        %920 = vperm.xlu0 %919, %v646
        %v921 = vpop.permute.xlu0 %920
        %924 = vset.pattern.permute.xlu0 0
        %925 = vperm.xlu0 %924, %v648
        %v926 = vpop.permute.xlu0 %925
        %929 = vset.pattern.permute.xlu0 0
        %930 = vperm.xlu0 %929, %v650
        %v931 = vpop.permute.xlu0 %930
        %934 = vset.pattern.permute.xlu0 0
        %935 = vperm.xlu0 %934, %v652
        %v936 = vpop.permute.xlu0 %935
        %939 = vset.pattern.permute.xlu0 0
        %940 = vperm.xlu0 %939, %v654
        %v941 = vpop.permute.xlu0 %940
        %944 = vset.pattern.permute.xlu0 0
        %945 = vperm.xlu0 %944, %v656
        %v946 = vpop.permute.xlu0 %945
        %949 = vset.pattern.permute.xlu0 0
        %950 = vperm.xlu0 %949, %v658
        %v951 = vpop.permute.xlu0 %950
        %954 = vset.pattern.permute.xlu0 0
        %955 = vperm.xlu0 %954, %v660
        %v956 = vpop.permute.xlu0 %955
        %959 = vset.pattern.permute.xlu0 0
        %960 = vperm.xlu0 %959, %v662
        %v961 = vpop.permute.xlu0 %960
        %964 = vset.pattern.permute.xlu0 0
        %965 = vperm.xlu0 %964, %v664
        %v966 = vpop.permute.xlu0 %965
        %969 = vset.pattern.permute.xlu0 0
        %970 = vperm.xlu0 %969, %v666
        %v971 = vpop.permute.xlu0 %970
        %974 = vset.pattern.permute.xlu0 0
        %975 = vperm.xlu0 %974, %v668
        %v976 = vpop.permute.xlu0 %975
        %979 = vset.pattern.permute.xlu0 0
        %980 = vperm.xlu0 %979, %v670
        %v981 = vpop.permute.xlu0 %980
        %984 = vset.pattern.permute.xlu0 0
        %985 = vperm.xlu0 %984, %v672
        %v986 = vpop.permute.xlu0 %985
        %989 = vset.pattern.permute.xlu0 0
        %990 = vperm.xlu0 %989, %v674
        %v991 = vpop.permute.xlu0 %990
        %994 = vset.pattern.permute.xlu0 0
        %995 = vperm.xlu0 %994, %v676
        %v996 = vpop.permute.xlu0 %995
        %v998 = vmul.f32 %v921, %v902
        %v999 = vmul.f32 %v926, %v903
        %v1000 = vmul.f32 %v931, %v904
        %v1001 = vmul.f32 %v936, %v905
        %v1002 = vmul.f32 %v941, %v906
        %v1003 = vmul.f32 %v946, %v907
        %v1004 = vmul.f32 %v951, %v908
        %v1005 = vmul.f32 %v956, %v909
        %v1006 = vmul.f32 %v961, %v910
        %v1007 = vmul.f32 %v966, %v911
        %v1008 = vmul.f32 %v971, %v912
        %v1009 = vmul.f32 %v976, %v913
        %v1010 = vmul.f32 %v981, %v914
        %v1011 = vmul.f32 %v986, %v915
        %v1012 = vmul.f32 %v991, %v916
        %v1013 = vmul.f32 %v996, %v917
        %1014 = vmatprep.subr.mxu0 0.0
        %1015 = vmatpush1.msra.mxu0 %v419
        %1016 = vmatprep.subr.mxu0 0.0
        %1017 = vmatpush1.msra.mxu0 %v418
        %1018 = vmatprep.subr.mxu0 0.0
        %1019 = vmatpush1.msra.mxu0 %v417
        %1020 = vmatprep.subr.mxu0 0.0
        %1021 = vmatpush1.msra.mxu0 %v416
        %1022 = vmatprep.subr.mxu0 0.0
        %1023 = vmatpush1.msra.mxu0 %v415
        %1024 = vmatprep.subr.mxu0 0.0
        %1025 = vmatpush1.msra.mxu0 %v414
        %1026 = vmatprep.subr.mxu0 0.0
        %1027 = vmatpush1.msra.mxu0 %v413
        %1028 = vmatprep.subr.mxu0 0.0
        %1029 = vmatpush1.msra.mxu0 %v412
        %1030 = vmatprep.subr.mxu0 0.0
        %1031 = vmatpush1.msra.mxu0 %v411
        %1032 = vmatprep.subr.mxu0 0.0
        %1033 = vmatpush1.msra.mxu0 %v410
        %1034 = vmatprep.subr.mxu0 0.0
        %1035 = vmatpush1.msra.mxu0 %v409
        %1036 = vmatprep.subr.mxu0 0.0
        %1037 = vmatpush1.msra.mxu0 %v408
        %1038 = vmatprep.subr.mxu0 0.0
        %1039 = vmatpush1.msra.mxu0 %v407
        %1040 = vmatprep.subr.mxu0 0.0
        %1041 = vmatpush1.msra.mxu0 %v406
        %1042 = vmatprep.subr.mxu0 0.0
        %1043 = vmatpush1.msra.mxu0 %v405
        %1044 = vmatprep.subr.mxu0 0.0
        %1045 = vmatpush1.msra.mxu0 %v404
        %1046 = vmatprep.subr.mxu0 0.0
        %1047 = vmatpush2.msra.mxu0 0.0
        %1048 = vmatprep.subr.mxu0 0.0
        %1049 = vmatpush2.msra.mxu0 0.0
        %1050 = vmatprep.subr.mxu0 0.0
        %1051 = vmatpush2.msra.mxu0 0.0
        %1052 = vmatprep.subr.mxu0 0.0
        %1053 = vmatpush2.msra.mxu0 0.0
        %1054 = vmatprep.subr.mxu0 0.0
        %1055 = vmatpush2.msra.mxu0 0.0
        %1056 = vmatprep.subr.mxu0 0.0
        %1057 = vmatpush2.msra.mxu0 0.0
        %1058 = vmatprep.subr.mxu0 0.0
        %1059 = vmatpush2.msra.mxu0 0.0
        %1060 = vmatprep.subr.mxu0 0.0
        %1061 = vmatpush2.msra.mxu0 0.0
        %1062 = vmatprep.subr.mxu0 0.0
        %1063 = vmatpush2.msra.mxu0 0.0
        %1064 = vmatprep.subr.mxu0 0.0
        %1065 = vmatpush2.msra.mxu0 0.0
        %1066 = vmatprep.subr.mxu0 0.0
        %1067 = vmatpush2.msra.mxu0 0.0
        %1068 = vmatprep.subr.mxu0 0.0
        %1069 = vmatpush2.msra.mxu0 0.0
        %1070 = vmatprep.subr.mxu0 0.0
        %1071 = vmatpush2.msra.mxu0 0.0
        %1072 = vmatprep.subr.mxu0 0.0
        %1073 = vmatpush2.msra.mxu0 0.0
        %1074 = vmatprep.subr.mxu0 0.0
        %1075 = vmatpush2.msra.mxu0 0.0
        %1076 = vmatprep.subr.mxu0 0.0
        %1077 = vmatpush2.msra.mxu0 0.0
        %1078 = vmatprep.mubr.f32.mxu0 0.0
        %1079 = vmatmul.mubr.f32.gmra.mxu0 %v774
        %v1080 = vpop.f32.mrf.mxu0
        %v1081 = vadd.f32 0.0, %v1080
        %v1082 = vpop.f32.mrf.mxu0
        %1083 = vmatprep.mubr.f32.mxu0 0.0
        %1084 = vmatmul.mubr.f32.gmra.mxu0 %v776
        %v1085 = vpop.f32.mrf.mxu0
        %v1086 = vadd.f32 0.0, %v1085
        %v1087 = vpop.f32.mrf.mxu0
        %1088 = vmatprep.mubr.f32.mxu0 0.0
        %1089 = vmatmul.mubr.f32.gmra.mxu0 %v778
        %v1090 = vpop.f32.mrf.mxu0
        %v1091 = vadd.f32 0.0, %v1090
        %v1092 = vpop.f32.mrf.mxu0
        %1093 = vmatprep.mubr.f32.mxu0 0.0
        %1094 = vmatmul.mubr.f32.gmra.mxu0 %v780
        %v1095 = vpop.f32.mrf.mxu0
        %v1096 = vadd.f32 0.0, %v1095
        %v1097 = vpop.f32.mrf.mxu0
        %1098 = vmatprep.mubr.f32.mxu0 0.0
        %1099 = vmatmul.mubr.f32.gmra.mxu0 %v782
        %v1100 = vpop.f32.mrf.mxu0
        %v1101 = vadd.f32 0.0, %v1100
        %v1102 = vpop.f32.mrf.mxu0
        %1103 = vmatprep.mubr.f32.mxu0 0.0
        %1104 = vmatmul.mubr.f32.gmra.mxu0 %v784
        %v1105 = vpop.f32.mrf.mxu0
        %v1106 = vadd.f32 0.0, %v1105
        %v1107 = vpop.f32.mrf.mxu0
        %1108 = vmatprep.mubr.f32.mxu0 0.0
        %1109 = vmatmul.mubr.f32.gmra.mxu0 %v786
        %v1110 = vpop.f32.mrf.mxu0
        %v1111 = vadd.f32 0.0, %v1110
        %v1112 = vpop.f32.mrf.mxu0
        %1113 = vmatprep.mubr.f32.mxu0 0.0
        %1114 = vmatmul.mubr.f32.gmra.mxu0 %v788
        %v1115 = vpop.f32.mrf.mxu0
        %v1116 = vadd.f32 0.0, %v1115
        %v1117 = vpop.f32.mrf.mxu0
        %1118 = vmatprep.mubr.f32.mxu0 0.0
        %1119 = vmatmul.mubr.f32.gmra.mxu0 %v790
        %v1120 = vpop.f32.mrf.mxu0
        %v1121 = vadd.f32 0.0, %v1120
        %v1122 = vpop.f32.mrf.mxu0
        %1123 = vmatprep.mubr.f32.mxu0 0.0
        %1124 = vmatmul.mubr.f32.gmra.mxu0 %v792
        %v1125 = vpop.f32.mrf.mxu0
        %v1126 = vadd.f32 0.0, %v1125
        %v1127 = vpop.f32.mrf.mxu0
        %1128 = vmatprep.mubr.f32.mxu0 0.0
        %1129 = vmatmul.mubr.f32.gmra.mxu0 %v794
        %v1130 = vpop.f32.mrf.mxu0
        %v1131 = vadd.f32 0.0, %v1130
        %v1132 = vpop.f32.mrf.mxu0
        %1133 = vmatprep.mubr.f32.mxu0 0.0
        %1134 = vmatmul.mubr.f32.gmra.mxu0 %v796
        %v1135 = vpop.f32.mrf.mxu0
        %v1136 = vadd.f32 0.0, %v1135
        %v1137 = vpop.f32.mrf.mxu0
        %1138 = vmatprep.mubr.f32.mxu0 0.0
        %1139 = vmatmul.mubr.f32.gmra.mxu0 %v798
        %v1140 = vpop.f32.mrf.mxu0
        %v1141 = vadd.f32 0.0, %v1140
        %v1142 = vpop.f32.mrf.mxu0
        %1143 = vmatprep.mubr.f32.mxu0 0.0
        %1144 = vmatmul.mubr.f32.gmra.mxu0 %v800
        %v1145 = vpop.f32.mrf.mxu0
        %v1146 = vadd.f32 0.0, %v1145
        %v1147 = vpop.f32.mrf.mxu0
        %1148 = vmatprep.mubr.f32.mxu0 0.0
        %1149 = vmatmul.mubr.f32.gmra.mxu0 %v802
        %v1150 = vpop.f32.mrf.mxu0
        %v1151 = vadd.f32 0.0, %v1150
        %v1152 = vpop.f32.mrf.mxu0
        %1153 = vmatprep.mubr.f32.mxu0 0.0
        %1154 = vmatmul.mubr.f32.gmra.mxu0 %v804
        %v1155 = vpop.f32.mrf.mxu0
        %v1156 = vadd.f32 0.0, %v1155
        %v1157 = vpop.f32.mrf.mxu0
        %1158 = vdwg.mxu0
        %v1159 = vadd.f32 %v998, %v1081
        %v1160 = vadd.f32 %v999, %v1086
        %v1161 = vadd.f32 %v1000, %v1091
        %v1162 = vadd.f32 %v1001, %v1096
        %v1163 = vadd.f32 %v1002, %v1101
        %v1164 = vadd.f32 %v1003, %v1106
        %v1165 = vadd.f32 %v1004, %v1111
        %v1166 = vadd.f32 %v1005, %v1116
        %v1167 = vadd.f32 %v1006, %v1121
        %v1168 = vadd.f32 %v1007, %v1126
        %v1169 = vadd.f32 %v1008, %v1131
        %v1170 = vadd.f32 %v1009, %v1136
        %v1171 = vadd.f32 %v1010, %v1141
        %v1172 = vadd.f32 %v1011, %v1146
        %v1173 = vadd.f32 %v1012, %v1151
        %v1174 = vadd.f32 %v1013, %v1156
        %1175 = vst [vmem:[#allocation4] sm:$0xff] %v1159
        %1176 = vst [vmem:[#allocation4 + $0x8] sm:$0xff] %v1160
        %1177 = vst [vmem:[#allocation4 + $0x10] sm:$0xff] %v1161
        %1178 = vst [vmem:[#allocation4 + $0x18] sm:$0xff] %v1162
        %1179 = vst [vmem:[#allocation4 + $0x20] sm:$0xff] %v1163
        %1180 = vst [vmem:[#allocation4 + $0x28] sm:$0xff] %v1164
        %1181 = vst [vmem:[#allocation4 + $0x30] sm:$0xff] %v1165
        %1182 = vst [vmem:[#allocation4 + $0x38] sm:$0xff] %v1166
        %1183 = vst [vmem:[#allocation4 + $0x40] sm:$0xff] %v1167
        %1184 = vst [vmem:[#allocation4 + $0x48] sm:$0xff] %v1168
        %1185 = vst [vmem:[#allocation4 + $0x50] sm:$0xff] %v1169
        %1186 = vst [vmem:[#allocation4 + $0x58] sm:$0xff] %v1170
        %1187 = vst [vmem:[#allocation4 + $0x60] sm:$0xff] %v1171
        %1188 = vst [vmem:[#allocation4 + $0x68] sm:$0xff] %v1172
        %1189 = vst [vmem:[#allocation4 + $0x70] sm:$0xff] %v1173
        %1190 = vst [vmem:[#allocation4 + $0x78] sm:$0xff] %v1174
        %1191 = vst.msk [vmem:[#allocation2] sm:$0xff] %vm885, %v613
        %1192 = vst.msk [vmem:[#allocation2 + $0x8] sm:$0xff] %vm885, %v614
        %1193 = vst.msk [vmem:[#allocation2 + $0x10] sm:$0xff] %vm885, %v615
        %1194 = vst.msk [vmem:[#allocation2 + $0x18] sm:$0xff] %vm885, %v616
        %1195 = vst.msk [vmem:[#allocation2 + $0x20] sm:$0xff] %vm885, %v617
        %1196 = vst.msk [vmem:[#allocation2 + $0x28] sm:$0xff] %vm885, %v618
        %1197 = vst.msk [vmem:[#allocation2 + $0x30] sm:$0xff] %vm885, %v619
        %1198 = vst.msk [vmem:[#allocation2 + $0x38] sm:$0xff] %vm885, %v620
        %1199 = vst.msk [vmem:[#allocation2 + $0x40] sm:$0xff] %vm885, %v621
        %1200 = vst.msk [vmem:[#allocation2 + $0x48] sm:$0xff] %vm885, %v622
        %1201 = vst.msk [vmem:[#allocation2 + $0x50] sm:$0xff] %vm885, %v623
        %1202 = vst.msk [vmem:[#allocation2 + $0x58] sm:$0xff] %vm885, %v624
        %1203 = vst.msk [vmem:[#allocation2 + $0x60] sm:$0xff] %vm885, %v625
        %1204 = vst.msk [vmem:[#allocation2 + $0x68] sm:$0xff] %vm885, %v626
        %1205 = vst.msk [vmem:[#allocation2 + $0x70] sm:$0xff] %vm885, %v627
        %1206 = vst.msk [vmem:[#allocation2 + $0x78] sm:$0xff] %vm885, %v628
        %p1207 = scmp.eq.s32.totalorder %s30, 1
        // Predicated region
        $region49: #{tpu_custom_call.1} parent=31 // pred_check
          %p1208 = pneg %p1207
        $region50: #{tpu_custom_call.1} parent=31 // pred_check_branch
          %1210 = sbr.rel (%p1208) target = $region52
        $region51: #{tpu_custom_call.1} parent=31 // pred_region
          %v1211 = vld [vmem:[#allocation3] sm:$0xff]
          %v1212 = vld [vmem:[#allocation3 + $0x8] sm:$0xff]
          %v1213 = vld [vmem:[#allocation3 + $0x10] sm:$0xff]
          %v1214 = vld [vmem:[#allocation3 + $0x18] sm:$0xff]
          %v1215 = vld [vmem:[#allocation3 + $0x20] sm:$0xff]
          %v1216 = vld [vmem:[#allocation3 + $0x28] sm:$0xff]
          %v1217 = vld [vmem:[#allocation3 + $0x30] sm:$0xff]
          %v1218 = vld [vmem:[#allocation3 + $0x38] sm:$0xff]
          %v1219 = vld [vmem:[#allocation3 + $0x40] sm:$0xff]
          %v1220 = vld [vmem:[#allocation3 + $0x48] sm:$0xff]
          %v1221 = vld [vmem:[#allocation3 + $0x50] sm:$0xff]
          %v1222 = vld [vmem:[#allocation3 + $0x58] sm:$0xff]
          %v1223 = vld [vmem:[#allocation3 + $0x60] sm:$0xff]
          %v1224 = vld [vmem:[#allocation3 + $0x68] sm:$0xff]
          %v1225 = vld [vmem:[#allocation3 + $0x70] sm:$0xff]
          %v1226 = vld [vmem:[#allocation3 + $0x78] sm:$0xff]
          %v1227 = vrcp.pop %v1211
          %v1228 = vrcp.pop %v1212
          %v1229 = vrcp.pop %v1213
          %v1230 = vrcp.pop %v1214
          %v1231 = vrcp.pop %v1215
          %v1232 = vrcp.pop %v1216
          %v1233 = vrcp.pop %v1217
          %v1234 = vrcp.pop %v1218
          %v1235 = vrcp.pop %v1219
          %v1236 = vrcp.pop %v1220
          %v1237 = vrcp.pop %v1221
          %v1238 = vrcp.pop %v1222
          %v1239 = vrcp.pop %v1223
          %v1240 = vrcp.pop %v1224
          %v1241 = vrcp.pop %v1225
          %v1242 = vrcp.pop %v1226
          %v1243 = vld [vmem:[#allocation4] sm:$0xff]
          %v1244 = vld [vmem:[#allocation4 + $0x8] sm:$0xff]
          %v1245 = vld [vmem:[#allocation4 + $0x10] sm:$0xff]
          %v1246 = vld [vmem:[#allocation4 + $0x18] sm:$0xff]
          %v1247 = vld [vmem:[#allocation4 + $0x20] sm:$0xff]
          %v1248 = vld [vmem:[#allocation4 + $0x28] sm:$0xff]
          %v1249 = vld [vmem:[#allocation4 + $0x30] sm:$0xff]
          %v1250 = vld [vmem:[#allocation4 + $0x38] sm:$0xff]
          %v1251 = vld [vmem:[#allocation4 + $0x40] sm:$0xff]
          %v1252 = vld [vmem:[#allocation4 + $0x48] sm:$0xff]
          %v1253 = vld [vmem:[#allocation4 + $0x50] sm:$0xff]
          %v1254 = vld [vmem:[#allocation4 + $0x58] sm:$0xff]
          %v1255 = vld [vmem:[#allocation4 + $0x60] sm:$0xff]
          %v1256 = vld [vmem:[#allocation4 + $0x68] sm:$0xff]
          %v1257 = vld [vmem:[#allocation4 + $0x70] sm:$0xff]
          %v1258 = vld [vmem:[#allocation4 + $0x78] sm:$0xff]
          %1260 = vset.pattern.permute.xlu0 0
          %1261 = vperm.xlu0 %1260, %v1227
          %v1262 = vpop.permute.xlu0 %1261
          %1265 = vset.pattern.permute.xlu0 0
          %1266 = vperm.xlu0 %1265, %v1228
          %v1267 = vpop.permute.xlu0 %1266
          %1270 = vset.pattern.permute.xlu0 0
          %1271 = vperm.xlu0 %1270, %v1229
          %v1272 = vpop.permute.xlu0 %1271
          %1275 = vset.pattern.permute.xlu0 0
          %1276 = vperm.xlu0 %1275, %v1230
          %v1277 = vpop.permute.xlu0 %1276
          %1280 = vset.pattern.permute.xlu0 0
          %1281 = vperm.xlu0 %1280, %v1231
          %v1282 = vpop.permute.xlu0 %1281
          %1285 = vset.pattern.permute.xlu0 0
          %1286 = vperm.xlu0 %1285, %v1232
          %v1287 = vpop.permute.xlu0 %1286
          %1290 = vset.pattern.permute.xlu0 0
          %1291 = vperm.xlu0 %1290, %v1233
          %v1292 = vpop.permute.xlu0 %1291
          %1295 = vset.pattern.permute.xlu0 0
          %1296 = vperm.xlu0 %1295, %v1234
          %v1297 = vpop.permute.xlu0 %1296
          %1300 = vset.pattern.permute.xlu0 0
          %1301 = vperm.xlu0 %1300, %v1235
          %v1302 = vpop.permute.xlu0 %1301
          %1305 = vset.pattern.permute.xlu0 0
          %1306 = vperm.xlu0 %1305, %v1236
          %v1307 = vpop.permute.xlu0 %1306
          %1310 = vset.pattern.permute.xlu0 0
          %1311 = vperm.xlu0 %1310, %v1237
          %v1312 = vpop.permute.xlu0 %1311
          %1315 = vset.pattern.permute.xlu0 0
          %1316 = vperm.xlu0 %1315, %v1238
          %v1317 = vpop.permute.xlu0 %1316
          %1320 = vset.pattern.permute.xlu0 0
          %1321 = vperm.xlu0 %1320, %v1239
          %v1322 = vpop.permute.xlu0 %1321
          %1325 = vset.pattern.permute.xlu0 0
          %1326 = vperm.xlu0 %1325, %v1240
          %v1327 = vpop.permute.xlu0 %1326
          %1330 = vset.pattern.permute.xlu0 0
          %1331 = vperm.xlu0 %1330, %v1241
          %v1332 = vpop.permute.xlu0 %1331
          %1335 = vset.pattern.permute.xlu0 0
          %1336 = vperm.xlu0 %1335, %v1242
          %v1337 = vpop.permute.xlu0 %1336
          %v1339 = vmul.f32 %v1243, %v1262
          %v1340 = vmul.f32 %v1244, %v1267
          %v1341 = vmul.f32 %v1245, %v1272
          %v1342 = vmul.f32 %v1246, %v1277
          %v1343 = vmul.f32 %v1247, %v1282
          %v1344 = vmul.f32 %v1248, %v1287
          %v1345 = vmul.f32 %v1249, %v1292
          %v1346 = vmul.f32 %v1250, %v1297
          %v1347 = vmul.f32 %v1251, %v1302
          %v1348 = vmul.f32 %v1252, %v1307
          %v1349 = vmul.f32 %v1253, %v1312
          %v1350 = vmul.f32 %v1254, %v1317
          %v1351 = vmul.f32 %v1255, %v1322
          %v1352 = vmul.f32 %v1256, %v1327
          %v1353 = vmul.f32 %v1257, %v1332
          %v1354 = vmul.f32 %v1258, %v1337
          %1355 = vst [vmem:[%s298] sm:$0xff] %v1339
          %1356 = vst [vmem:[%s298 + $0x8] sm:$0xff] %v1340
          %1357 = vst [vmem:[%s298 + $0x10] sm:$0xff] %v1341
          %1358 = vst [vmem:[%s298 + $0x18] sm:$0xff] %v1342
          %1359 = vst [vmem:[%s298 + $0x20] sm:$0xff] %v1343
          %1360 = vst [vmem:[%s298 + $0x28] sm:$0xff] %v1344
          %1361 = vst [vmem:[%s298 + $0x30] sm:$0xff] %v1345
          %1362 = vst [vmem:[%s298 + $0x38] sm:$0xff] %v1346
          %1363 = vst [vmem:[%s298 + $0x40] sm:$0xff] %v1347
          %1364 = vst [vmem:[%s298 + $0x48] sm:$0xff] %v1348
          %1365 = vst [vmem:[%s298 + $0x50] sm:$0xff] %v1349
          %1366 = vst [vmem:[%s298 + $0x58] sm:$0xff] %v1350
          %1367 = vst [vmem:[%s298 + $0x60] sm:$0xff] %v1351
          %1368 = vst [vmem:[%s298 + $0x68] sm:$0xff] %v1352
          %1369 = vst [vmem:[%s298 + $0x70] sm:$0xff] %v1353
          %1370 = vst [vmem:[%s298 + $0x78] sm:$0xff] %v1354
        $region52: #{tpu_custom_call.1} parent=31 // pred_fallthru
          _
        %s1371 = sand.u32 %s136, 1
        %s1372 = scalar_lea.sflag [#allocation7], %s1371
        %s1373 = sand.u32 %s136, 1
        %s1374 = smul.addr %s1373, 128
        %s1375 = scalar_lea.vmem [#allocation11], %s1374
        // Predicated region
        $region53: #{tpu_custom_call.1} parent=31 // pred_check
          %p1376 = pneg %p146
        $region54: #{tpu_custom_call.1} parent=31 // pred_check_branch
          %1378 = sbr.rel (%p1376) target = $region56
        $region55: #{tpu_custom_call.1} parent=31 // pred_region
          %s1379 = smul.u32 16, %s29
          %s1381 = ssub.s32 2048, 2048
          %1382 = vsyncadd %s1372, %s1381
          %s1383 = smul.addr %s28, 32
          %s1384 = sadd.s32 %s1379, %s1383
          %s1385 = smul.addr %s1384, 128
          %s1386 = scalar_lea.hbm %s3, %s1385
          %s1387 = sshll.u32 %s1375, 4
          %s1388 = int_to_ptr.vmem [resolvable:$true] %s1387
          %1393 = dma.vmem_to_hbm [thread:$0]  %s1388, 2048, %s1386, %s1372, 128, 128, 8
        $region56: #{tpu_custom_call.1} parent=31 // pred_fallthru
          _
      $region32: #{tpu_custom_call.1} parent=5 // pred_fallthru
        _
      %p1394 = scmp.le.s32.totalorder 2, %s18
      // Predicated region
      $region57: #{tpu_custom_call.1} parent=5 // pred_check
        %p1395 = pneg %p1394
      $region58: #{tpu_custom_call.1} parent=5 // pred_check_branch
        %1397 = sbr.rel (%p1395) target = $region60
      $region59: #{tpu_custom_call.1} parent=5 // pred_region
        %s1398 = ssub.s32 %s18, 2
        // Predicated region
        $region61: #{tpu_custom_call.1} parent=59 // pred_check
          %p1399 = pneg %p152
        $region62: #{tpu_custom_call.1} parent=59 // pred_check_branch
          %1401 = sbr.rel (%p1399) target = $region64
        $region63: #{tpu_custom_call.1} parent=59 // pred_region
          %s1402 = sand.u32 %s137, 1
          %s1403 = scalar_lea.sflag [#allocation7], %s1402
          %s1404 = sand.u32 %s137, 1
          %s1405 = smul.addr %s1404, 128
          %s1406 = scalar_lea.vmem [#allocation11], %s1405
          %1407 = dma.done %s1403, 2048
        $region64: #{tpu_custom_call.1} parent=59 // pred_fallthru
          _
      $region60: #{tpu_custom_call.1} parent=5 // pred_fallthru
        _
    $region6: #{tpu_custom_call.1} parent=1 // loop_footer
      %s22 = sadd.s32 1, %s18
    $region7: #{tpu_custom_call.1} parent=1 // loop_footer_branch
      %17 = sbr.rel target = $region3
    $region8: #{tpu_custom_call.1} parent=1 // loop_exit
      _
    %1408 = vsyncpa [#allocation6], 1
    %s1409 = scalar_lea.sflag [#allocation6], 1
    %1410 = vsyncpa %s1409, 1
    %1411 = vsyncpa [#allocation9], 1
    %s1412 = scalar_lea.sflag [#allocation9], 1
    %1413 = vsyncpa %s1412, 1
    %1414 = vsyncpa [#allocation7], 1
    %s1415 = scalar_lea.sflag [#allocation7], 1
    %1416 = vsyncpa %s1415, 1

</llo_original>
